<compile_context>
chip_gen: v7x
topology: tpu7x:2x2x1
jax: 0.10.0
libtpu: 0.0.40
codegen_flags: <defaults>
</compile_context>

<pallas_src>
import functools

import jax
import jax.numpy as jnp
from jax.experimental import pallas as pl
from jax.experimental.pallas import tpu as pltpu

LANE = 128
SUBLANE = 8


def _round_up(x: int, m: int) -> int:
    return ((x + m - 1) // m) * m


def _decoder_kernel(z_ref, w1_ref, b1_ref, w2_ref, b2_ref, outT_ref, *, single_obs):
    """Fused MLP on one block of `bc` rows of z.

    z_ref  : (bc, latent_dim)      row-major rows of z (compact HBM read)
    w1_ref : (nh_pad, latent_dim)  fc1.weight, rows zero-padded
    b1_ref : (nh_pad, 1)
    w2_ref : (nh_pad, 1)           fc2.weight as a column      (obs_dim == 1)
             (obs_pad, nh_pad)     fc2.weight pre-transposed   (obs_dim  > 1)
    b2_ref : (1, 1) or (obs_pad, 1)
    outT_ref: (1, bc) or (obs_pad, bc)  -- lane-dense output tile
    """
    z = z_ref[...].astype(jnp.float32)                     # (bc, latent_dim)
    # fc1 on the MXU, contracting the latent axis of both operands (A @ B^T):
    # result is the transposed hidden activation (nh_pad, bc), i.e. rows of z
    # live on lanes for the rest of the kernel.
    hT = jax.lax.dot_general(
        w1_ref[...], z, (((1,), (1,)), ((), ())),
        preferred_element_type=jnp.float32)                # (nh_pad, bc)
    hT = jnp.maximum(hT + b1_ref[...], 0.0)                # bias + ReLU (VPU)
    if single_obs:
        # Degenerate fc2 (one output row): VPU broadcast-multiply + sublane
        # reduce on the XLU -- cheaper than a ~1%-utilized MXU matmul.
        o = jnp.sum(hT * w2_ref[...], axis=0, keepdims=True)          # (1, bc)
    else:
        o = jnp.dot(w2_ref[...], hT, preferred_element_type=jnp.float32)  # (obs_pad, bc)
    outT_ref[...] = (o + b2_ref[...]).astype(outT_ref.dtype)


def decoder_forward(z, w1, b1, w2, b2, *, block_rows=None, max_block_rows=16384,
                    min_pallas_rows=1024, transfer_dtype=None):
    """Decoder forward: ReLU(z @ w1.T + b1) @ w2.T + b2.

    z  : (..., latent_dim) -- all leading dims flattened into one row axis and
         processed by a single pallas_call.
    w1 : (nhidden, latent_dim)   b1: (nhidden,)   (PyTorch nn.Linear layout)
    w2 : (obs_dim, nhidden)      b2: (obs_dim,)
    transfer_dtype: e.g. jnp.bfloat16 to halve streamed-input HBM bytes on
         v6e/v7x (compute stays f32; default None keeps f32 transfers).
    Returns (..., obs_dim) float32.
    """
    nhidden, latent_dim = w1.shape
    obs_dim = w2.shape[0]
    lead_shape = z.shape[:-1]
    z2 = z.reshape(-1, latent_dim)
    n = z2.shape[0]

    # Small-n / empty fallback: launch + wrapper overhead exceeds the work.
    if n < max(int(min_pallas_rows), 1):
        h = jnp.maximum(z2.astype(jnp.float32) @ w1.T + b1, 0.0)
        out = h @ w2.T + b2
        return out.reshape(*lead_shape, obs_dim)

    z2 = z2.astype(jnp.float32 if transfer_dtype is None else transfer_dtype)

    # Block of rows per grid step: big enough to amortize per-step overhead,
    # small enough to keep the (bc, latent) lane-padded VMEM tile modest, and
    # sized so grid >= 2 (both v7x TensorCores) whenever n allows.
    if block_rows is None:
        bc = _round_up(pl.cdiv(n, 2), LANE)
        bc = max(1024, min(bc, int(max_block_rows)))
    else:
        bc = max(LANE, _round_up(min(int(block_rows), n), LANE))
    grid = (pl.cdiv(n, bc),)          # ragged tail handled by Pallas edge clipping

    # Zero-padded weights (tiny, VMEM-resident, constant index_maps).
    nh_pad = _round_up(nhidden, SUBLANE)
    w1_p = jnp.zeros((nh_pad, latent_dim), jnp.float32).at[:nhidden].set(
        w1.astype(jnp.float32))
    b1_p = jnp.zeros((nh_pad, 1), jnp.float32).at[:nhidden, 0].set(
        b1.astype(jnp.float32))
    if obs_dim == 1:
        w2_p = jnp.zeros((nh_pad, 1), jnp.float32).at[:nhidden, 0].set(
            w2[0].astype(jnp.float32))
        b2_p = b2.reshape(1, 1).astype(jnp.float32)
        out_rows = 1
    else:
        obs_pad = _round_up(obs_dim, SUBLANE)
        # Pre-transposed so the kernel does a standard (obs_pad, nh) @ (nh, bc).
        w2_p = jnp.zeros((obs_pad, nh_pad), jnp.float32).at[:obs_dim, :nhidden].set(
            w2.astype(jnp.float32))
        b2_p = jnp.zeros((obs_pad, 1), jnp.float32).at[:obs_dim, 0].set(
            b2.astype(jnp.float32))
        out_rows = obs_pad

    kernel = functools.partial(_decoder_kernel, single_obs=(obs_dim == 1))

    w_bytes = 4 * (w1_p.size + b1_p.size + w2_p.size + b2_p.size)
    cost = pl.CostEstimate(
        flops=2 * n * nh_pad * (latent_dim + out_rows),
        transcendentals=0,
        bytes_accessed=n * latent_dim * z2.dtype.itemsize + n * out_rows * 4 + w_bytes)

    outT = pl.pallas_call(
        kernel,
        out_shape=jax.ShapeDtypeStruct((out_rows, n), jnp.float32),
        grid=grid,
        in_specs=[
            pl.BlockSpec((bc, latent_dim), lambda i: (i, 0)),      # z rows (stream, compact)
            pl.BlockSpec((nh_pad, latent_dim), lambda i: (0, 0)),  # w1 (resident)
            pl.BlockSpec((nh_pad, 1), lambda i: (0, 0)),           # b1 (resident)
            pl.BlockSpec(w2_p.shape, lambda i: (0, 0)),            # w2 (resident)
            pl.BlockSpec(b2_p.shape, lambda i: (0, 0)),            # b2 (resident)
        ],
        out_specs=pl.BlockSpec((out_rows, bc), lambda i: (0, i)),  # lane-dense store
        compiler_params=pltpu.CompilerParams(
            dimension_semantics=("parallel",)),                    # megacore / v7x
        cost_estimate=cost,
    )(z2, w1_p, b1_p, w2_p, b2_p)

    out = outT[:obs_dim, :].T                                      # (n, obs_dim)
    return out.reshape(*lead_shape, obs_dim)


def init_decoder_params(key, latent_dim=4, nhidden=20, obs_dim=1):
    """Mimics PyTorch nn.Linear init; weights kept in PyTorch (out, in) layout."""
    k1, k2, k3, k4 = jax.random.split(key, 4)
    bound1 = 1.0 / jnp.sqrt(latent_dim)
    bound2 = 1.0 / jnp.sqrt(nhidden)
    w1 = jax.random.uniform(k1, (nhidden, latent_dim), jnp.float32, -bound1, bound1)
    b1 = jax.random.uniform(k2, (nhidden,), jnp.float32, -bound1, bound1)
    w2 = jax.random.uniform(k3, (obs_dim, nhidden), jnp.float32, -bound2, bound2)
    b2 = jax.random.uniform(k4, (obs_dim,), jnp.float32, -bound2, bound2)
    return w1, b1, w2, b2


def decoder_reference(z, w1, b1, w2, b2):
    """Pure-JAX reference of the PyTorch forward (nn.Linear convention)."""
    h = jnp.maximum(z @ w1.T + b1, 0.0)
    return h @ w2.T + b2


if __name__ == "__main__":
    latent_dim, nhidden, obs_dim = 4, 20, 1
    key = jax.random.PRNGKey(0)
    kz1, kz2, kz3, kp1, kp2 = jax.random.split(key, 5)
    w1, b1, w2, b2 = init_decoder_params(kp1, latent_dim, nhidden, obs_dim)

    dec = jax.jit(decoder_forward)

    # Case 1: SDE-style (T, B, latent) batch, large enough to hit the Pallas
    # path, with a ragged row count (not a multiple of 128) to exercise the
    # cdiv grid / clipped tail block.
    T, B = 31, 50                                   # n = 1550 rows
    z_seq = jax.random.normal(kz1, (T, B, latent_dim), jnp.float32)
    out_seq = jax.block_until_ready(dec(z_seq, w1, b1, w2, b2))
    ref_seq = decoder_reference(z_seq, w1, b1, w2, b2)
    assert out_seq.shape == (T, B, obs_dim), out_seq.shape
    assert jnp.allclose(out_seq, ref_seq, atol=2e-5, rtol=1e-5), "mismatch (3-D ragged)"

    # Case 2: tiny batch -> small-n pure-JAX fallback, still exact.
    z_small = jax.random.normal(kz2, (8, latent_dim), jnp.float32)
    out_small = jax.block_until_ready(dec(z_small, w1, b1, w2, b2))
    ref_small = decoder_reference(z_small, w1, b1, w2, b2)
    assert out_small.shape == (8, obs_dim), out_small.shape
    assert jnp.allclose(out_small, ref_small, atol=2e-5, rtol=1e-5), "mismatch (small-n)"

    # Case 3: obs_dim > 1 exercises the MXU fc2 path with pre-transposed w2.
    obs3 = 3
    w1b, b1b, w2b, b2b = init_decoder_params(kp2, latent_dim, nhidden, obs3)
    z3 = jax.random.normal(kz3, (2048, latent_dim), jnp.float32)
    out3 = jax.block_until_ready(dec(z3, w1b, b1b, w2b, b2b))
    ref3 = decoder_reference(z3, w1b, b1b, w2b, b2b)
    assert out3.shape == (2048, obs3), out3.shape
    assert jnp.allclose(out3, ref3, atol=2e-5, rtol=1e-5), "mismatch (obs_dim=3)"

    print("KERNEL_OK")
</pallas_src>

<mosaic_0001>
module attributes {stable_mosaic.version = 11 : i64} {
  func.func @_decoder_kernel(%arg0: i32, %arg1: memref<1024x4xf32, #tpu.memory_space<vmem>>, %arg2: memref<24x4xf32, #tpu.memory_space<vmem>>, %arg3: memref<24x1xf32, #tpu.memory_space<vmem>>, %arg4: memref<24x1xf32, #tpu.memory_space<vmem>>, %arg5: memref<1x1xf32, #tpu.memory_space<vmem>>, %arg6: memref<1x1024xf32, #tpu.memory_space<vmem>>) attributes {dimension_semantics = [#tpu.dimension_semantics<parallel>], iteration_bounds = array<i64: 2>, scalar_prefetch = 0 : i64, scratch_operands = 0 : i64, tpu.core_type = #tpu.core_type<tc>, window_params = [{transform_indices = @transform_0, window_bounds = array<i64: 1024, 4>}, {pipeline_mode = #tpu.pipeline_mode<synchronous>, transform_indices = @transform_1, window_bounds = array<i64: 24, 4>}, {pipeline_mode = #tpu.pipeline_mode<synchronous>, transform_indices = @transform_2, window_bounds = array<i64: 24, 1>}, {pipeline_mode = #tpu.pipeline_mode<synchronous>, transform_indices = @transform_3, window_bounds = array<i64: 24, 1>}, {pipeline_mode = #tpu.pipeline_mode<synchronous>, transform_indices = @transform_4, window_bounds = array<i64: 1, 1>}, {transform_indices = @transform_5, window_bounds = array<i64: 1, 1024>}]} {
    %c0 = arith.constant 0 : index
    %c0_0 = arith.constant 0 : index
    %0 = vector.load %arg1[%c0, %c0_0] : memref<1024x4xf32, #tpu.memory_space<vmem>>, vector<1024x4xf32>
    %c0_1 = arith.constant 0 : index
    %c0_2 = arith.constant 0 : index
    %1 = vector.load %arg2[%c0_1, %c0_2] : memref<24x4xf32, #tpu.memory_space<vmem>>, vector<24x4xf32>
    %cst = arith.constant dense<0.000000e+00> : vector<24x1024xf32>
    %2 = tpu.matmul %1, %0, %cst {dimension_numbers = #tpu.dot_dimension_numbers<[1], [1], [0], [0], [0, 0, 1, 0], [], []>} : vector<24x4xf32>, vector<1024x4xf32>, vector<24x1024xf32> -> vector<24x1024xf32>
    %c0_3 = arith.constant 0 : index
    %c0_4 = arith.constant 0 : index
    %3 = vector.load %arg3[%c0_3, %c0_4] : memref<24x1xf32, #tpu.memory_space<vmem>>, vector<24x1xf32>
    %4 = vector.broadcast %3 : vector<24x1xf32> to vector<24x1024xf32>
    %5 = arith.addf %2, %4 : vector<24x1024xf32>
    %cst_5 = arith.constant 0.000000e+00 : f32
    %6 = vector.broadcast %cst_5 : f32 to vector<24x1024xf32>
    %7 = arith.maximumf %5, %6 : vector<24x1024xf32>
    %c0_6 = arith.constant 0 : index
    %c0_7 = arith.constant 0 : index
    %8 = vector.load %arg4[%c0_6, %c0_7] : memref<24x1xf32, #tpu.memory_space<vmem>>, vector<24x1xf32>
    %9 = vector.broadcast %8 : vector<24x1xf32> to vector<24x1024xf32>
    %10 = arith.mulf %7, %9 : vector<24x1024xf32>
    %cst_8 = arith.constant dense<0.000000e+00> : vector<1024xf32>
    %11 = vector.multi_reduction <add>, %10, %cst_8 [0] : vector<24x1024xf32> to vector<1024xf32>
    %12 = vector.shape_cast %11 : vector<1024xf32> to vector<1x1024xf32>
    %c0_9 = arith.constant 0 : index
    %c0_10 = arith.constant 0 : index
    %13 = vector.load %arg5[%c0_9, %c0_10] : memref<1x1xf32, #tpu.memory_space<vmem>>, vector<1x1xf32>
    %14 = vector.broadcast %13 : vector<1x1xf32> to vector<1x1024xf32>
    %15 = arith.addf %12, %14 : vector<1x1024xf32>
    %c0_11 = arith.constant 0 : index
    %c0_12 = arith.constant 0 : index
    %16 = vector.load %arg6[%c0_11, %c0_12] : memref<1x1024xf32, #tpu.memory_space<vmem>>, vector<1x1024xf32>
    tpu.vector_store %arg6[%c0_11, %c0_12], %15 {strides = array<i32>} : memref<1x1024xf32, #tpu.memory_space<vmem>>, vector<1x1024xf32>,
    return
  }
  func.func @transform_0(%arg0: i32) -> (i32, i32) {
    %c0_i32 = arith.constant 0 : i32
    %c0_i32_0 = arith.constant 0 : i32
    return %arg0, %c0_i32 : i32, i32
  }
  func.func @transform_1(%arg0: i32) -> (i32, i32) {
    %c0_i32 = arith.constant 0 : i32
    %c0_i32_0 = arith.constant 0 : i32
    %c0_i32_1 = arith.constant 0 : i32
    return %c0_i32, %c0_i32_0 : i32, i32
  }
  func.func @transform_2(%arg0: i32) -> (i32, i32) {
    %c0_i32 = arith.constant 0 : i32
    %c0_i32_0 = arith.constant 0 : i32
    %c0_i32_1 = arith.constant 0 : i32
    return %c0_i32, %c0_i32_0 : i32, i32
  }
  func.func @transform_3(%arg0: i32) -> (i32, i32) {
    %c0_i32 = arith.constant 0 : i32
    %c0_i32_0 = arith.constant 0 : i32
    %c0_i32_1 = arith.constant 0 : i32
    return %c0_i32, %c0_i32_0 : i32, i32
  }
  func.func @transform_4(%arg0: i32) -> (i32, i32) {
    %c0_i32 = arith.constant 0 : i32
    %c0_i32_0 = arith.constant 0 : i32
    %c0_i32_1 = arith.constant 0 : i32
    return %c0_i32, %c0_i32_0 : i32, i32
  }
  func.func @transform_5(%arg0: i32) -> (i32, i32) {
    %c0_i32 = arith.constant 0 : i32
    %c0_i32_0 = arith.constant 0 : i32
    return %c0_i32, %arg0 : i32, i32
  }
}

</mosaic_0001>

<llo_original>
// kernel: decoder_forward.1
$region0: #{decoder_forward.1}
  #allocation0 [shape = 'u32[]', space=smem, size = 0x4, offset = 0x4, fixed_abs, tag = 'smem constant byte address 0x4 - core index']
  #allocation1 [shape = 'u32[144,128]{1,0:T(1,128)}', space=vmem, size = 0x12000, scoped, tag = 'internal scratch']
  #allocation2 [shape = 'f32[1,1]{1,0:T(1,128)S(1)}', space=vmem, size = 0x200, scoped, tag = 'scoped memory for decoder_forward.1']
  %s0 = inlined_call_operand.vmem [shape: f32[1550,4], index: 0, kind: input, shape index: {}]
  %s1 = inlined_call_operand.vmem [shape: f32[24,4], index: 1, kind: input, shape index: {}]
  %s2 = inlined_call_operand.vmem [shape: f32[24,1], index: 2, kind: input, shape index: {}]
  %s3 = inlined_call_operand.vmem [shape: f32[24,1], index: 3, kind: input, shape index: {}]
  %s4 = inlined_call_operand.<no memory space> [shape: f32[1,1], index: 4, kind: input, shape index: {}]
  %s5 = inlined_call_operand.vmem [shape: f32[1,1550], index: 5, kind: output, shape index: {}]
  %s6 = sld [smem:[#allocation0]]
  $region115: #{decoder_forward.1} parent=0
    _
  %s8 = ssub.s32 1, %s6
  %s9 = scalar_select 0, %s8, %s6
  %v10 = vstv %s4
  %11 = vst [vmem:[#allocation2] sm:$0x1] %v10
  $region1: #{decoder_forward.1} parent=0
    #allocation3 [shape = 'u8[8192]{0}', space=vmem, size = 0x2000, scoped, tag = 'output window, operand 0']
    loop: start=0, step=1, limit=4
    $region2: #{decoder_forward.1} parent=1 // loop_pre_header
      _
    $region3: #{decoder_forward.1} parent=1 // loop_header
      %s13 = sphi 0, %s17
      %p14 = scmp.ge.s32.totalorder %s13, 4
      %s23 = sphi 0, %s25
      %s26 = sphi 0, %s23
      %s27 = sphi 0, %s26
      %s43 = sphi 0, %s27
      %s47 = sphi 0, %s47
      %s49 = sphi 0, %s47
      %s50 = sphi 0, %s49
      %s64 = sphi 0, %s50
      %s68 = sphi 0, %s68
      %s70 = sphi 0, %s68
      %s71 = sphi 0, %s70
      %s85 = sphi 0, %s71
      %s89 = sphi 0, %s89
      %s91 = sphi 0, %s89
      %s92 = sphi 0, %s91
      %s106 = sphi 0, %s92
      %s110 = sphi 0, %s110
      %s112 = sphi 0, %s110
      %s113 = sphi 0, %s112
      %s127 = sphi 0, %s113
      %s133 = sphi 0, %s135
      %s136 = sphi 0, %s133
      %s137 = sphi 0, %s136
      %s153 = sphi 0, %s137
    $region4: #{decoder_forward.1} parent=1 // loop_header_branch
      %16 = sbr.rel (%p14) target = $region8
    $region5: #{decoder_forward.1} parent=1 // loop_body
      %s18 = ssub.s32 %s13, 1
      %s19 = ssub.s32 %s13, 2
      %s20 = sadd.s32 %s13, 1
      %s21 = ssub.s32 %s13, %s20
      %p22 = scmp.eq.s32.totalorder %s21, 0
      %s24 = sadd.s32 %s23, 1
      %s25 = scalar_select %p22, %s23, %s24
      %p28 = pneg %p22
      %p29 = scmp.eq.s32.totalorder %s13, 1
      %p30 = por %p28, %p29
      %p31 = scmp.ne.s32.totalorder %s23, %s26
      %p32 = scmp.eq.s32.totalorder %s13, 0
      %p33 = por %p31, %p32
      %p34 = scmp.ne.s32.totalorder %s23, %s26
      %p35 = scmp.eq.s32.totalorder %s18, 1
      %p36 = por %p34, %p35
      %p37 = scmp.ne.s32.totalorder %s26, %s27
      %p38 = scmp.eq.s32.totalorder %s18, 0
      %p39 = por %p37, %p38
      %p40 = scmp.ne.s32.totalorder %s26, %s27
      %p41 = scmp.eq.s32.totalorder %s19, 1
      %p42 = por %p40, %p41
      %p44 = scmp.ne.s32.totalorder %s27, %s43
      %p45 = scmp.eq.s32.totalorder %s19, 0
      %p46 = por %p44, %p45
      %s48 = sadd.s32 %s47, 1
      %p51 = scmp.eq.s32.totalorder %s13, 1
      %p52 = scmp.ne.s32.totalorder %s47, %s49
      %p53 = scmp.eq.s32.totalorder %s13, 0
      %p54 = por %p52, %p53
      %p55 = scmp.ne.s32.totalorder %s47, %s49
      %p56 = scmp.eq.s32.totalorder %s18, 1
      %p57 = por %p55, %p56
      %p58 = scmp.ne.s32.totalorder %s49, %s50
      %p59 = scmp.eq.s32.totalorder %s18, 0
      %p60 = por %p58, %p59
      %p61 = scmp.ne.s32.totalorder %s49, %s50
      %p62 = scmp.eq.s32.totalorder %s19, 1
      %p63 = por %p61, %p62
      %p65 = scmp.ne.s32.totalorder %s50, %s64
      %p66 = scmp.eq.s32.totalorder %s19, 0
      %p67 = por %p65, %p66
      %s69 = sadd.s32 %s68, 1
      %p72 = scmp.eq.s32.totalorder %s13, 1
      %p73 = scmp.ne.s32.totalorder %s68, %s70
      %p74 = scmp.eq.s32.totalorder %s13, 0
      %p75 = por %p73, %p74
      %p76 = scmp.ne.s32.totalorder %s68, %s70
      %p77 = scmp.eq.s32.totalorder %s18, 1
      %p78 = por %p76, %p77
      %p79 = scmp.ne.s32.totalorder %s70, %s71
      %p80 = scmp.eq.s32.totalorder %s18, 0
      %p81 = por %p79, %p80
      %p82 = scmp.ne.s32.totalorder %s70, %s71
      %p83 = scmp.eq.s32.totalorder %s19, 1
      %p84 = por %p82, %p83
      %p86 = scmp.ne.s32.totalorder %s71, %s85
      %p87 = scmp.eq.s32.totalorder %s19, 0
      %p88 = por %p86, %p87
      %s90 = sadd.s32 %s89, 1
      %p93 = scmp.eq.s32.totalorder %s13, 1
      %p94 = scmp.ne.s32.totalorder %s89, %s91
      %p95 = scmp.eq.s32.totalorder %s13, 0
      %p96 = por %p94, %p95
      %p97 = scmp.ne.s32.totalorder %s89, %s91
      %p98 = scmp.eq.s32.totalorder %s18, 1
      %p99 = por %p97, %p98
      %p100 = scmp.ne.s32.totalorder %s91, %s92
      %p101 = scmp.eq.s32.totalorder %s18, 0
      %p102 = por %p100, %p101
      %p103 = scmp.ne.s32.totalorder %s91, %s92
      %p104 = scmp.eq.s32.totalorder %s19, 1
      %p105 = por %p103, %p104
      %p107 = scmp.ne.s32.totalorder %s92, %s106
      %p108 = scmp.eq.s32.totalorder %s19, 0
      %p109 = por %p107, %p108
      %s111 = sadd.s32 %s110, 1
      %p114 = scmp.eq.s32.totalorder %s13, 1
      %p115 = scmp.ne.s32.totalorder %s110, %s112
      %p116 = scmp.eq.s32.totalorder %s13, 0
      %p117 = por %p115, %p116
      %p118 = scmp.ne.s32.totalorder %s110, %s112
      %p119 = scmp.eq.s32.totalorder %s18, 1
      %p120 = por %p118, %p119
      %p121 = scmp.ne.s32.totalorder %s112, %s113
      %p122 = scmp.eq.s32.totalorder %s18, 0
      %p123 = por %p121, %p122
      %p124 = scmp.ne.s32.totalorder %s112, %s113
      %p125 = scmp.eq.s32.totalorder %s19, 1
      %p126 = por %p124, %p125
      %p128 = scmp.ne.s32.totalorder %s113, %s127
      %p129 = scmp.eq.s32.totalorder %s19, 0
      %p130 = por %p128, %p129
      %s131 = ssub.s32 %s13, %s20
      %p132 = scmp.eq.s32.totalorder %s131, 0
      %s134 = sadd.s32 %s133, 1
      %s135 = scalar_select %p132, %s133, %s134
      %p138 = pneg %p132
      %p139 = scmp.eq.s32.totalorder %s13, 1
      %p140 = por %p138, %p139
      %p141 = scmp.ne.s32.totalorder %s133, %s136
      %p142 = scmp.eq.s32.totalorder %s13, 0
      %p143 = por %p141, %p142
      %p144 = scmp.ne.s32.totalorder %s133, %s136
      %p145 = scmp.eq.s32.totalorder %s18, 1
      %p146 = por %p144, %p145
      %p147 = scmp.ne.s32.totalorder %s136, %s137
      %p148 = scmp.eq.s32.totalorder %s18, 0
      %p149 = por %p147, %p148
      %p150 = scmp.ne.s32.totalorder %s136, %s137
      %p151 = scmp.eq.s32.totalorder %s19, 1
      %p152 = por %p150, %p151
      %p154 = scmp.ne.s32.totalorder %s137, %s153
      %p155 = scmp.eq.s32.totalorder %s19, 0
      %p156 = por %p154, %p155
      %p157 = scmp.le.s32.totalorder 1, %s13
      %p158 = scmp.lt.s32.totalorder %s13, 3
      %p159 = pnand %p157, %p158
      %p160 = pneg %p159
      // Predicated region
      $region9: #{decoder_forward.1} parent=5 // pred_check
        _
      $region10: #{decoder_forward.1} parent=5 // pred_check_branch
        %162 = sbr.rel (%p159) target = $region12
      $region11: #{decoder_forward.1} parent=5 // pred_region
        %s163 = ssub.s32 %s13, 1
        // Predicated region
        $region13: #{decoder_forward.1} parent=11 // pred_check
          %p164 = pneg %p60
        $region14: #{decoder_forward.1} parent=11 // pred_check_branch
          %166 = sbr.rel (%p164) target = $region16
        $region15: #{decoder_forward.1} parent=11 // pred_region
          _
        $region16: #{decoder_forward.1} parent=11 // pred_fallthru
          _
        // Predicated region
        $region17: #{decoder_forward.1} parent=11 // pred_check
          %p167 = pneg %p81
        $region18: #{decoder_forward.1} parent=11 // pred_check_branch
          %169 = sbr.rel (%p167) target = $region20
        $region19: #{decoder_forward.1} parent=11 // pred_region
          _
        $region20: #{decoder_forward.1} parent=11 // pred_fallthru
          _
        // Predicated region
        $region21: #{decoder_forward.1} parent=11 // pred_check
          %p170 = pneg %p102
        $region22: #{decoder_forward.1} parent=11 // pred_check_branch
          %172 = sbr.rel (%p170) target = $region24
        $region23: #{decoder_forward.1} parent=11 // pred_region
          _
        $region24: #{decoder_forward.1} parent=11 // pred_fallthru
          _
        // Predicated region
        $region25: #{decoder_forward.1} parent=11 // pred_check
          %p173 = pneg %p123
        $region26: #{decoder_forward.1} parent=11 // pred_check_branch
          %175 = sbr.rel (%p173) target = $region28
        $region27: #{decoder_forward.1} parent=11 // pred_region
          _
        $region28: #{decoder_forward.1} parent=11 // pred_fallthru
          _
      $region12: #{decoder_forward.1} parent=5 // pred_fallthru
        _
      %p176 = scmp.lt.s32.totalorder %s13, 2
      // Predicated region
      $region29: #{decoder_forward.1} parent=5 // pred_check
        %p177 = pneg %p176
      $region30: #{decoder_forward.1} parent=5 // pred_check_branch
        %179 = sbr.rel (%p177) target = $region32
      $region31: #{decoder_forward.1} parent=5 // pred_region
        // Predicated region
        $region33: #{decoder_forward.1} parent=31 // pred_check
          %p180 = pneg %p33
        $region34: #{decoder_forward.1} parent=31 // pred_check_branch
          %182 = sbr.rel (%p180) target = $region36
        $region35: #{decoder_forward.1} parent=31 // pred_region
          %s183 = smul.u32 128, %s13
          %s184 = ssub.s32 194, %s183
          %p185 = scmp.lt.s32.totalorder %s184, 128
          %s186 = scalar_select %p185, %s184, 128
          %s187 = smul.u32 128, %s186
          %p188 = scmp.lt.s32.totalorder %s183, 193
          %s189 = scalar_select %p188, %s183, 193
          %s190 = smul.addr %s189, 8
          %s191 = scalar_lea.vmem %s0, %s190
          %s192 = smul.u32 128, %s13
          %s193 = ssub.s32 194, %s192
          %p194 = scmp.lt.s32.totalorder %s193, 128
          %s195 = scalar_select %p194, %s193, 128
          %s196 = smul.u32 128, %s195
        $region36: #{decoder_forward.1} parent=31 // pred_fallthru
          _
      $region32: #{decoder_forward.1} parent=5 // pred_fallthru
        _
      %p197 = scmp.le.s32.totalorder 1, %s13
      %p198 = scmp.lt.s32.totalorder %s13, 3
      %p199 = pnand %p197, %p198
      %p200 = pneg %p199
      // Predicated region
      $region37: #{decoder_forward.1} parent=5 // pred_check
        _
      $region38: #{decoder_forward.1} parent=5 // pred_check_branch
        %202 = sbr.rel (%p199) target = $region40
      $region39: #{decoder_forward.1} parent=5 // pred_region
        %s203 = ssub.s32 %s13, 1
        %s204 = smul.u32 128, %s18
        %s205 = ssub.s32 194, %s204
        %p206 = scmp.lt.s32.totalorder %s205, 128
        %s207 = scalar_select %p206, %s205, 128
        %s208 = smul.u32 128, %s207
        %p209 = scmp.lt.s32.totalorder %s204, 193
        %s210 = scalar_select %p209, %s204, 193
        %s211 = smul.addr %s210, 8
        %s212 = scalar_lea.vmem %s0, %s211
        %p213 = pneg %p39
        %p214 = pneg %p36
        %p215 = pneg %p60
        %p216 = pneg %p57
        %p217 = pneg %p81
        %p218 = pneg %p78
        %p219 = pneg %p102
        %p220 = pneg %p99
        %p221 = pneg %p123
        %p222 = pneg %p120
        %p223 = pneg %p149
        %p224 = pneg %p146
        %s225 = sand.u32 %s136, 1
        %s226 = sand.u32 %s136, 1
        %s227 = smul.addr %s226, 8
        %s228 = scalar_lea.vmem [#allocation3], %s227
        %s229 = smul.u32 128, %s18
        %s230 = ssub.s32 194, %s229
        %p231 = scmp.lt.s32.totalorder %s230, 128
        %s232 = scalar_select %p231, %s230, 128
        %s233 = smul.u32 128, %s232
        %p234 = scmp.lt.s32.totalorder %s229, 193
        %s235 = scalar_select %p234, %s229, 193
        %s236 = smul.addr %s235, 8
        %s237 = scalar_lea.vmem %s0, %s236
        %s238 = smul.u32 128, %s18
        %s239 = ssub.s32 194, %s238
        %p240 = scmp.lt.s32.totalorder %s239, 128
        %s241 = scalar_select %p240, %s239, 128
        %s242 = smul.u32 128, %s241
        %s243 = smul.u32 8, %s18
        %s244 = ssub.s32 13, %s243
        %p245 = scmp.lt.s32.totalorder %s244, 8
        %s246 = scalar_select %p245, %s244, 8
        %s247 = smul.u32 16, %s246
        %v248 = vld [vmem:[%s237] sm:$0xff]
        %v249 = vld [vmem:[%s237 + $0x8] sm:$0xff]
        %v250 = vld [vmem:[%s237 + $0x10] sm:$0xff]
        %v251 = vld [vmem:[%s237 + $0x18] sm:$0xff]
        %v252 = vld [vmem:[%s237 + $0x20] sm:$0xff]
        %v253 = vld [vmem:[%s237 + $0x28] sm:$0xff]
        %v254 = vld [vmem:[%s237 + $0x30] sm:$0xff]
        %v255 = vld [vmem:[%s237 + $0x38] sm:$0xff]
        %v256 = vld [vmem:[%s237 + $0x40] sm:$0xff]
        %v257 = vld [vmem:[%s237 + $0x48] sm:$0xff]
        %v258 = vld [vmem:[%s237 + $0x50] sm:$0xff]
        %v259 = vld [vmem:[%s237 + $0x58] sm:$0xff]
        %v260 = vld [vmem:[%s237 + $0x60] sm:$0xff]
        %v261 = vld [vmem:[%s237 + $0x68] sm:$0xff]
        %v262 = vld [vmem:[%s237 + $0x70] sm:$0xff]
        %v263 = vld [vmem:[%s237 + $0x78] sm:$0xff]
        %v264 = vld [vmem:[%s237 + $0x80] sm:$0xff]
        %v265 = vld [vmem:[%s237 + $0x88] sm:$0xff]
        %v266 = vld [vmem:[%s237 + $0x90] sm:$0xff]
        %v267 = vld [vmem:[%s237 + $0x98] sm:$0xff]
        %v268 = vld [vmem:[%s237 + $0xa0] sm:$0xff]
        %v269 = vld [vmem:[%s237 + $0xa8] sm:$0xff]
        %v270 = vld [vmem:[%s237 + $0xb0] sm:$0xff]
        %v271 = vld [vmem:[%s237 + $0xb8] sm:$0xff]
        %v272 = vld [vmem:[%s237 + $0xc0] sm:$0xff]
        %v273 = vld [vmem:[%s237 + $0xc8] sm:$0xff]
        %v274 = vld [vmem:[%s237 + $0xd0] sm:$0xff]
        %v275 = vld [vmem:[%s237 + $0xd8] sm:$0xff]
        %v276 = vld [vmem:[%s237 + $0xe0] sm:$0xff]
        %v277 = vld [vmem:[%s237 + $0xe8] sm:$0xff]
        %v278 = vld [vmem:[%s237 + $0xf0] sm:$0xff]
        %v279 = vld [vmem:[%s237 + $0xf8] sm:$0xff]
        %v280 = vld [vmem:[%s237 + $0x100] sm:$0xff]
        %v281 = vld [vmem:[%s237 + $0x108] sm:$0xff]
        %v282 = vld [vmem:[%s237 + $0x110] sm:$0xff]
        %v283 = vld [vmem:[%s237 + $0x118] sm:$0xff]
        %v284 = vld [vmem:[%s237 + $0x120] sm:$0xff]
        %v285 = vld [vmem:[%s237 + $0x128] sm:$0xff]
        %v286 = vld [vmem:[%s237 + $0x130] sm:$0xff]
        %v287 = vld [vmem:[%s237 + $0x138] sm:$0xff]
        %v288 = vld [vmem:[%s237 + $0x140] sm:$0xff]
        %v289 = vld [vmem:[%s237 + $0x148] sm:$0xff]
        %v290 = vld [vmem:[%s237 + $0x150] sm:$0xff]
        %v291 = vld [vmem:[%s237 + $0x158] sm:$0xff]
        %v292 = vld [vmem:[%s237 + $0x160] sm:$0xff]
        %v293 = vld [vmem:[%s237 + $0x168] sm:$0xff]
        %v294 = vld [vmem:[%s237 + $0x170] sm:$0xff]
        %v295 = vld [vmem:[%s237 + $0x178] sm:$0xff]
        %v296 = vld [vmem:[%s237 + $0x180] sm:$0xff]
        %v297 = vld [vmem:[%s237 + $0x188] sm:$0xff]
        %v298 = vld [vmem:[%s237 + $0x190] sm:$0xff]
        %v299 = vld [vmem:[%s237 + $0x198] sm:$0xff]
        %v300 = vld [vmem:[%s237 + $0x1a0] sm:$0xff]
        %v301 = vld [vmem:[%s237 + $0x1a8] sm:$0xff]
        %v302 = vld [vmem:[%s237 + $0x1b0] sm:$0xff]
        %v303 = vld [vmem:[%s237 + $0x1b8] sm:$0xff]
        %v304 = vld [vmem:[%s237 + $0x1c0] sm:$0xff]
        %v305 = vld [vmem:[%s237 + $0x1c8] sm:$0xff]
        %v306 = vld [vmem:[%s237 + $0x1d0] sm:$0xff]
        %v307 = vld [vmem:[%s237 + $0x1d8] sm:$0xff]
        %v308 = vld [vmem:[%s237 + $0x1e0] sm:$0xff]
        %v309 = vld [vmem:[%s237 + $0x1e8] sm:$0xff]
        %v310 = vld [vmem:[%s237 + $0x1f0] sm:$0xff]
        %v311 = vld [vmem:[%s237 + $0x1f8] sm:$0xff]
        %v312 = vld [vmem:[%s237 + $0x200] sm:$0xff]
        %v313 = vld [vmem:[%s237 + $0x208] sm:$0xff]
        %v314 = vld [vmem:[%s237 + $0x210] sm:$0xff]
        %v315 = vld [vmem:[%s237 + $0x218] sm:$0xff]
        %v316 = vld [vmem:[%s237 + $0x220] sm:$0xff]
        %v317 = vld [vmem:[%s237 + $0x228] sm:$0xff]
        %v318 = vld [vmem:[%s237 + $0x230] sm:$0xff]
        %v319 = vld [vmem:[%s237 + $0x238] sm:$0xff]
        %v320 = vld [vmem:[%s237 + $0x240] sm:$0xff]
        %v321 = vld [vmem:[%s237 + $0x248] sm:$0xff]
        %v322 = vld [vmem:[%s237 + $0x250] sm:$0xff]
        %v323 = vld [vmem:[%s237 + $0x258] sm:$0xff]
        %v324 = vld [vmem:[%s237 + $0x260] sm:$0xff]
        %v325 = vld [vmem:[%s237 + $0x268] sm:$0xff]
        %v326 = vld [vmem:[%s237 + $0x270] sm:$0xff]
        %v327 = vld [vmem:[%s237 + $0x278] sm:$0xff]
        %v328 = vld [vmem:[%s237 + $0x280] sm:$0xff]
        %v329 = vld [vmem:[%s237 + $0x288] sm:$0xff]
        %v330 = vld [vmem:[%s237 + $0x290] sm:$0xff]
        %v331 = vld [vmem:[%s237 + $0x298] sm:$0xff]
        %v332 = vld [vmem:[%s237 + $0x2a0] sm:$0xff]
        %v333 = vld [vmem:[%s237 + $0x2a8] sm:$0xff]
        %v334 = vld [vmem:[%s237 + $0x2b0] sm:$0xff]
        %v335 = vld [vmem:[%s237 + $0x2b8] sm:$0xff]
        %v336 = vld [vmem:[%s237 + $0x2c0] sm:$0xff]
        %v337 = vld [vmem:[%s237 + $0x2c8] sm:$0xff]
        %v338 = vld [vmem:[%s237 + $0x2d0] sm:$0xff]
        %v339 = vld [vmem:[%s237 + $0x2d8] sm:$0xff]
        %v340 = vld [vmem:[%s237 + $0x2e0] sm:$0xff]
        %v341 = vld [vmem:[%s237 + $0x2e8] sm:$0xff]
        %v342 = vld [vmem:[%s237 + $0x2f0] sm:$0xff]
        %v343 = vld [vmem:[%s237 + $0x2f8] sm:$0xff]
        %v344 = vld [vmem:[%s237 + $0x300] sm:$0xff]
        %v345 = vld [vmem:[%s237 + $0x308] sm:$0xff]
        %v346 = vld [vmem:[%s237 + $0x310] sm:$0xff]
        %v347 = vld [vmem:[%s237 + $0x318] sm:$0xff]
        %v348 = vld [vmem:[%s237 + $0x320] sm:$0xff]
        %v349 = vld [vmem:[%s237 + $0x328] sm:$0xff]
        %v350 = vld [vmem:[%s237 + $0x330] sm:$0xff]
        %v351 = vld [vmem:[%s237 + $0x338] sm:$0xff]
        %v352 = vld [vmem:[%s237 + $0x340] sm:$0xff]
        %v353 = vld [vmem:[%s237 + $0x348] sm:$0xff]
        %v354 = vld [vmem:[%s237 + $0x350] sm:$0xff]
        %v355 = vld [vmem:[%s237 + $0x358] sm:$0xff]
        %v356 = vld [vmem:[%s237 + $0x360] sm:$0xff]
        %v357 = vld [vmem:[%s237 + $0x368] sm:$0xff]
        %v358 = vld [vmem:[%s237 + $0x370] sm:$0xff]
        %v359 = vld [vmem:[%s237 + $0x378] sm:$0xff]
        %v360 = vld [vmem:[%s237 + $0x380] sm:$0xff]
        %v361 = vld [vmem:[%s237 + $0x388] sm:$0xff]
        %v362 = vld [vmem:[%s237 + $0x390] sm:$0xff]
        %v363 = vld [vmem:[%s237 + $0x398] sm:$0xff]
        %v364 = vld [vmem:[%s237 + $0x3a0] sm:$0xff]
        %v365 = vld [vmem:[%s237 + $0x3a8] sm:$0xff]
        %v366 = vld [vmem:[%s237 + $0x3b0] sm:$0xff]
        %v367 = vld [vmem:[%s237 + $0x3b8] sm:$0xff]
        %v368 = vld [vmem:[%s237 + $0x3c0] sm:$0xff]
        %v369 = vld [vmem:[%s237 + $0x3c8] sm:$0xff]
        %v370 = vld [vmem:[%s237 + $0x3d0] sm:$0xff]
        %v371 = vld [vmem:[%s237 + $0x3d8] sm:$0xff]
        %v372 = vld [vmem:[%s237 + $0x3e0] sm:$0xff]
        %v373 = vld [vmem:[%s237 + $0x3e8] sm:$0xff]
        %v374 = vld [vmem:[%s237 + $0x3f0] sm:$0xff]
        %v375 = vld [vmem:[%s237 + $0x3f8] sm:$0xff]
        %v376 = vld [vmem:[%s1] sm:$0xff]
        %v377 = vld [vmem:[%s1 + $0x8] sm:$0xff]
        %v378 = vld [vmem:[%s1 + $0x10] sm:$0xff]
        %v379 = vld [vmem:[%s2] sm:$0xff]
        %v380 = vld [vmem:[%s2 + $0x8] sm:$0xff]
        %v381 = vld [vmem:[%s2 + $0x10] sm:$0xff]
        %383 = vset.pattern.permute.xlu0 0
        %384 = vperm.xlu0 %383, %v379
        %v385 = vpop.permute.xlu0 %384
        %388 = vset.pattern.permute.xlu0 0
        %389 = vperm.xlu0 %388, %v380
        %v390 = vpop.permute.xlu0 %389
        %393 = vset.pattern.permute.xlu0 0
        %394 = vperm.xlu0 %393, %v381
        %v395 = vpop.permute.xlu0 %394
        %vm397 = vcmask 31744
        %v399 = vsel %vm397, %v376, 0
        %v402 = vsel %vm397, %v377, 0
        %v405 = vsel %vm397, %v378, 0
        %v408 = vsel %vm397, %v248, 0
        %v411 = vsel %vm397, %v249, 0
        %v414 = vsel %vm397, %v250, 0
        %v417 = vsel %vm397, %v251, 0
        %v420 = vsel %vm397, %v252, 0
        %v423 = vsel %vm397, %v253, 0
        %v426 = vsel %vm397, %v254, 0
        %v429 = vsel %vm397, %v255, 0
        %v432 = vsel %vm397, %v256, 0
        %v435 = vsel %vm397, %v257, 0
        %v438 = vsel %vm397, %v258, 0
        %v441 = vsel %vm397, %v259, 0
        %v444 = vsel %vm397, %v260, 0
        %v447 = vsel %vm397, %v261, 0
        %v450 = vsel %vm397, %v262, 0
        %v453 = vsel %vm397, %v263, 0
        %v456 = vsel %vm397, %v264, 0
        %v459 = vsel %vm397, %v265, 0
        %v462 = vsel %vm397, %v266, 0
        %v465 = vsel %vm397, %v267, 0
        %v468 = vsel %vm397, %v268, 0
        %v471 = vsel %vm397, %v269, 0
        %v474 = vsel %vm397, %v270, 0
        %v477 = vsel %vm397, %v271, 0
        %v480 = vsel %vm397, %v272, 0
        %v483 = vsel %vm397, %v273, 0
        %v486 = vsel %vm397, %v274, 0
        %v489 = vsel %vm397, %v275, 0
        %v492 = vsel %vm397, %v276, 0
        %v495 = vsel %vm397, %v277, 0
        %v498 = vsel %vm397, %v278, 0
        %v501 = vsel %vm397, %v279, 0
        %v504 = vsel %vm397, %v280, 0
        %v507 = vsel %vm397, %v281, 0
        %v510 = vsel %vm397, %v282, 0
        %v513 = vsel %vm397, %v283, 0
        %v516 = vsel %vm397, %v284, 0
        %v519 = vsel %vm397, %v285, 0
        %v522 = vsel %vm397, %v286, 0
        %v525 = vsel %vm397, %v287, 0
        %v528 = vsel %vm397, %v288, 0
        %v531 = vsel %vm397, %v289, 0
        %v534 = vsel %vm397, %v290, 0
        %v537 = vsel %vm397, %v291, 0
        %v540 = vsel %vm397, %v292, 0
        %v543 = vsel %vm397, %v293, 0
        %v546 = vsel %vm397, %v294, 0
        %v549 = vsel %vm397, %v295, 0
        %v552 = vsel %vm397, %v296, 0
        %v555 = vsel %vm397, %v297, 0
        %v558 = vsel %vm397, %v298, 0
        %v561 = vsel %vm397, %v299, 0
        %v564 = vsel %vm397, %v300, 0
        %v567 = vsel %vm397, %v301, 0
        %v570 = vsel %vm397, %v302, 0
        %v573 = vsel %vm397, %v303, 0
        %v576 = vsel %vm397, %v304, 0
        %v579 = vsel %vm397, %v305, 0
        %v582 = vsel %vm397, %v306, 0
        %v585 = vsel %vm397, %v307, 0
        %v588 = vsel %vm397, %v308, 0
        %v591 = vsel %vm397, %v309, 0
        %v594 = vsel %vm397, %v310, 0
        %v597 = vsel %vm397, %v311, 0
        %v600 = vsel %vm397, %v312, 0
        %v603 = vsel %vm397, %v313, 0
        %v606 = vsel %vm397, %v314, 0
        %v609 = vsel %vm397, %v315, 0
        %v612 = vsel %vm397, %v316, 0
        %v615 = vsel %vm397, %v317, 0
        %v618 = vsel %vm397, %v318, 0
        %v621 = vsel %vm397, %v319, 0
        %v624 = vsel %vm397, %v320, 0
        %v627 = vsel %vm397, %v321, 0
        %v630 = vsel %vm397, %v322, 0
        %v633 = vsel %vm397, %v323, 0
        %v636 = vsel %vm397, %v324, 0
        %v639 = vsel %vm397, %v325, 0
        %v642 = vsel %vm397, %v326, 0
        %v645 = vsel %vm397, %v327, 0
        %v648 = vsel %vm397, %v328, 0
        %v651 = vsel %vm397, %v329, 0
        %v654 = vsel %vm397, %v330, 0
        %v657 = vsel %vm397, %v331, 0
        %v660 = vsel %vm397, %v332, 0
        %v663 = vsel %vm397, %v333, 0
        %v666 = vsel %vm397, %v334, 0
        %v669 = vsel %vm397, %v335, 0
        %v672 = vsel %vm397, %v336, 0
        %v675 = vsel %vm397, %v337, 0
        %v678 = vsel %vm397, %v338, 0
        %v681 = vsel %vm397, %v339, 0
        %v684 = vsel %vm397, %v340, 0
        %v687 = vsel %vm397, %v341, 0
        %v690 = vsel %vm397, %v342, 0
        %v693 = vsel %vm397, %v343, 0
        %v696 = vsel %vm397, %v344, 0
        %v699 = vsel %vm397, %v345, 0
        %v702 = vsel %vm397, %v346, 0
        %v705 = vsel %vm397, %v347, 0
        %v708 = vsel %vm397, %v348, 0
        %v711 = vsel %vm397, %v349, 0
        %v714 = vsel %vm397, %v350, 0
        %v717 = vsel %vm397, %v351, 0
        %v720 = vsel %vm397, %v352, 0
        %v723 = vsel %vm397, %v353, 0
        %v726 = vsel %vm397, %v354, 0
        %v729 = vsel %vm397, %v355, 0
        %v732 = vsel %vm397, %v356, 0
        %v735 = vsel %vm397, %v357, 0
        %v738 = vsel %vm397, %v358, 0
        %v741 = vsel %vm397, %v359, 0
        %v744 = vsel %vm397, %v360, 0
        %v747 = vsel %vm397, %v361, 0
        %v750 = vsel %vm397, %v362, 0
        %v753 = vsel %vm397, %v363, 0
        %v756 = vsel %vm397, %v364, 0
        %v759 = vsel %vm397, %v365, 0
        %v762 = vsel %vm397, %v366, 0
        %v765 = vsel %vm397, %v367, 0
        %v768 = vsel %vm397, %v368, 0
        %v771 = vsel %vm397, %v369, 0
        %v774 = vsel %vm397, %v370, 0
        %v777 = vsel %vm397, %v371, 0
        %v780 = vsel %vm397, %v372, 0
        %v783 = vsel %vm397, %v373, 0
        %v786 = vsel %vm397, %v374, 0
        %v789 = vsel %vm397, %v375, 0
        %791 = vmatprep.subr.mxu0 0.0
        %792 = vmatpush1.xpose.msra.mxu0 %v408
        %793 = vmatprep.subr.mxu0 0.0
        %794 = vmatpush1.xpose.msra.mxu0 %v411
        %795 = vmatprep.subr.mxu0 0.0
        %796 = vmatpush1.xpose.msra.mxu0 %v414
        %797 = vmatprep.subr.mxu0 0.0
        %798 = vmatpush1.xpose.msra.mxu0 %v417
        %799 = vmatprep.subr.mxu0 0.0
        %800 = vmatpush1.xpose.msra.mxu0 %v420
        %801 = vmatprep.subr.mxu0 0.0
        %802 = vmatpush1.xpose.msra.mxu0 %v423
        %803 = vmatprep.subr.mxu0 0.0
        %804 = vmatpush1.xpose.msra.mxu0 %v426
        %805 = vmatprep.subr.mxu0 0.0
        %806 = vmatpush1.xpose.msra.mxu0 %v429
        %807 = vmatprep.subr.mxu0 0.0
        %808 = vmatpush1.xpose.msra.mxu0 %v432
        %809 = vmatprep.subr.mxu0 0.0
        %810 = vmatpush1.xpose.msra.mxu0 %v435
        %811 = vmatprep.subr.mxu0 0.0
        %812 = vmatpush1.xpose.msra.mxu0 %v438
        %813 = vmatprep.subr.mxu0 0.0
        %814 = vmatpush1.xpose.msra.mxu0 %v441
        %815 = vmatprep.subr.mxu0 0.0
        %816 = vmatpush1.xpose.msra.mxu0 %v444
        %817 = vmatprep.subr.mxu0 0.0
        %818 = vmatpush1.xpose.msra.mxu0 %v447
        %819 = vmatprep.subr.mxu0 0.0
        %820 = vmatpush1.xpose.msra.mxu0 %v450
        %821 = vmatprep.subr.mxu0 0.0
        %822 = vmatpush1.xpose.msra.mxu0 %v453
        %823 = vmatprep.subr.mxu0 0.0
        %824 = vmatpush1.xpose.msra.mxu0 %v456
        %825 = vmatprep.subr.mxu0 0.0
        %826 = vmatpush1.xpose.msra.mxu0 %v459
        %827 = vmatprep.subr.mxu0 0.0
        %828 = vmatpush1.xpose.msra.mxu0 %v462
        %829 = vmatprep.subr.mxu0 0.0
        %830 = vmatpush1.xpose.msra.mxu0 %v465
        %831 = vmatprep.subr.mxu0 0.0
        %832 = vmatpush1.xpose.msra.mxu0 %v468
        %833 = vmatprep.subr.mxu0 0.0
        %834 = vmatpush1.xpose.msra.mxu0 %v471
        %835 = vmatprep.subr.mxu0 0.0
        %836 = vmatpush1.xpose.msra.mxu0 %v474
        %837 = vmatprep.subr.mxu0 0.0
        %838 = vmatpush1.xpose.msra.mxu0 %v477
        %839 = vmatprep.subr.mxu0 0.0
        %840 = vmatpush1.xpose.msra.mxu0 %v480
        %841 = vmatprep.subr.mxu0 0.0
        %842 = vmatpush1.xpose.msra.mxu0 %v483
        %843 = vmatprep.subr.mxu0 0.0
        %844 = vmatpush1.xpose.msra.mxu0 %v486
        %845 = vmatprep.subr.mxu0 0.0
        %846 = vmatpush1.xpose.msra.mxu0 %v489
        %847 = vmatprep.subr.mxu0 0.0
        %848 = vmatpush1.xpose.msra.mxu0 %v492
        %849 = vmatprep.subr.mxu0 0.0
        %850 = vmatpush1.xpose.msra.mxu0 %v495
        %851 = vmatprep.subr.mxu0 0.0
        %852 = vmatpush1.xpose.msra.mxu0 %v498
        %853 = vmatprep.subr.mxu0 0.0
        %854 = vmatpush1.xpose.msra.mxu0 %v501
        %855 = vmatprep.mubr.f32.mxu0 0.0
        %856 = vmatmul.mubr.f32.gmra.mrb[0].mxu0 %v399
        %v857 = vpop.f32.mrb[0].mxu0
        %v858 = vadd.f32 %v385, %v857
        %v859 = vpop.f32.mrb[0].mxu0
        %v860 = vadd.f32 %v385, %v859
        %861 = vmatprep.mubr.f32.mxu0 0.0
        %862 = vmatmul.mubr.f32.gmra.mrb[0].mxu0 %v402
        %v863 = vpop.f32.mrb[0].mxu0
        %v864 = vadd.f32 %v390, %v863
        %v865 = vpop.f32.mrb[0].mxu0
        %v866 = vadd.f32 %v390, %v865
        %867 = vmatprep.mubr.f32.mxu0 0.0
        %868 = vmatmul.mubr.f32.gmra.mrb[0].mxu0 %v405
        %v869 = vpop.f32.mrb[0].mxu0
        %v870 = vadd.f32 %v395, %v869
        %v871 = vpop.f32.mrb[0].mxu0
        %v872 = vadd.f32 %v395, %v871
        %873 = vdwg.mxu0
        %874 = vmatprep.subr.mxu0 0.0
        %875 = vmatpush1.xpose.msra.mxu0 %v504
        %876 = vmatprep.subr.mxu0 0.0
        %877 = vmatpush1.xpose.msra.mxu0 %v507
        %878 = vmatprep.subr.mxu0 0.0
        %879 = vmatpush1.xpose.msra.mxu0 %v510
        %880 = vmatprep.subr.mxu0 0.0
        %881 = vmatpush1.xpose.msra.mxu0 %v513
        %882 = vmatprep.subr.mxu0 0.0
        %883 = vmatpush1.xpose.msra.mxu0 %v516
        %884 = vmatprep.subr.mxu0 0.0
        %885 = vmatpush1.xpose.msra.mxu0 %v519
        %886 = vmatprep.subr.mxu0 0.0
        %887 = vmatpush1.xpose.msra.mxu0 %v522
        %888 = vmatprep.subr.mxu0 0.0
        %889 = vmatpush1.xpose.msra.mxu0 %v525
        %890 = vmatprep.subr.mxu0 0.0
        %891 = vmatpush1.xpose.msra.mxu0 %v528
        %892 = vmatprep.subr.mxu0 0.0
        %893 = vmatpush1.xpose.msra.mxu0 %v531
        %894 = vmatprep.subr.mxu0 0.0
        %895 = vmatpush1.xpose.msra.mxu0 %v534
        %896 = vmatprep.subr.mxu0 0.0
        %897 = vmatpush1.xpose.msra.mxu0 %v537
        %898 = vmatprep.subr.mxu0 0.0
        %899 = vmatpush1.xpose.msra.mxu0 %v540
        %900 = vmatprep.subr.mxu0 0.0
        %901 = vmatpush1.xpose.msra.mxu0 %v543
        %902 = vmatprep.subr.mxu0 0.0
        %903 = vmatpush1.xpose.msra.mxu0 %v546
        %904 = vmatprep.subr.mxu0 0.0
        %905 = vmatpush1.xpose.msra.mxu0 %v549
        %906 = vmatprep.subr.mxu0 0.0
        %907 = vmatpush1.xpose.msra.mxu0 %v552
        %908 = vmatprep.subr.mxu0 0.0
        %909 = vmatpush1.xpose.msra.mxu0 %v555
        %910 = vmatprep.subr.mxu0 0.0
        %911 = vmatpush1.xpose.msra.mxu0 %v558
        %912 = vmatprep.subr.mxu0 0.0
        %913 = vmatpush1.xpose.msra.mxu0 %v561
        %914 = vmatprep.subr.mxu0 0.0
        %915 = vmatpush1.xpose.msra.mxu0 %v564
        %916 = vmatprep.subr.mxu0 0.0
        %917 = vmatpush1.xpose.msra.mxu0 %v567
        %918 = vmatprep.subr.mxu0 0.0
        %919 = vmatpush1.xpose.msra.mxu0 %v570
        %920 = vmatprep.subr.mxu0 0.0
        %921 = vmatpush1.xpose.msra.mxu0 %v573
        %922 = vmatprep.subr.mxu0 0.0
        %923 = vmatpush1.xpose.msra.mxu0 %v576
        %924 = vmatprep.subr.mxu0 0.0
        %925 = vmatpush1.xpose.msra.mxu0 %v579
        %926 = vmatprep.subr.mxu0 0.0
        %927 = vmatpush1.xpose.msra.mxu0 %v582
        %928 = vmatprep.subr.mxu0 0.0
        %929 = vmatpush1.xpose.msra.mxu0 %v585
        %930 = vmatprep.subr.mxu0 0.0
        %931 = vmatpush1.xpose.msra.mxu0 %v588
        %932 = vmatprep.subr.mxu0 0.0
        %933 = vmatpush1.xpose.msra.mxu0 %v591
        %934 = vmatprep.subr.mxu0 0.0
        %935 = vmatpush1.xpose.msra.mxu0 %v594
        %936 = vmatprep.subr.mxu0 0.0
        %937 = vmatpush1.xpose.msra.mxu0 %v597
        %938 = vmatprep.mubr.f32.mxu0 0.0
        %939 = vmatmul.mubr.f32.gmra.mrb[0].mxu0 %v399
        %v940 = vpop.f32.mrb[0].mxu0
        %v941 = vadd.f32 %v385, %v940
        %v942 = vpop.f32.mrb[0].mxu0
        %v943 = vadd.f32 %v385, %v942
        %944 = vmatprep.mubr.f32.mxu0 0.0
        %945 = vmatmul.mubr.f32.gmra.mrb[0].mxu0 %v402
        %v946 = vpop.f32.mrb[0].mxu0
        %v947 = vadd.f32 %v390, %v946
        %v948 = vpop.f32.mrb[0].mxu0
        %v949 = vadd.f32 %v390, %v948
        %950 = vmatprep.mubr.f32.mxu0 0.0
        %951 = vmatmul.mubr.f32.gmra.mrb[0].mxu0 %v405
        %v952 = vpop.f32.mrb[0].mxu0
        %v953 = vadd.f32 %v395, %v952
        %v954 = vpop.f32.mrb[0].mxu0
        %v955 = vadd.f32 %v395, %v954
        %956 = vdwg.mxu0
        %957 = vmatprep.subr.mxu0 0.0
        %958 = vmatpush1.xpose.msra.mxu0 %v600
        %959 = vmatprep.subr.mxu0 0.0
        %960 = vmatpush1.xpose.msra.mxu0 %v603
        %961 = vmatprep.subr.mxu0 0.0
        %962 = vmatpush1.xpose.msra.mxu0 %v606
        %963 = vmatprep.subr.mxu0 0.0
        %964 = vmatpush1.xpose.msra.mxu0 %v609
        %965 = vmatprep.subr.mxu0 0.0
        %966 = vmatpush1.xpose.msra.mxu0 %v612
        %967 = vmatprep.subr.mxu0 0.0
        %968 = vmatpush1.xpose.msra.mxu0 %v615
        %969 = vmatprep.subr.mxu0 0.0
        %970 = vmatpush1.xpose.msra.mxu0 %v618
        %971 = vmatprep.subr.mxu0 0.0
        %972 = vmatpush1.xpose.msra.mxu0 %v621
        %973 = vmatprep.subr.mxu0 0.0
        %974 = vmatpush1.xpose.msra.mxu0 %v624
        %975 = vmatprep.subr.mxu0 0.0
        %976 = vmatpush1.xpose.msra.mxu0 %v627
        %977 = vmatprep.subr.mxu0 0.0
        %978 = vmatpush1.xpose.msra.mxu0 %v630
        %979 = vmatprep.subr.mxu0 0.0
        %980 = vmatpush1.xpose.msra.mxu0 %v633
        %981 = vmatprep.subr.mxu0 0.0
        %982 = vmatpush1.xpose.msra.mxu0 %v636
        %983 = vmatprep.subr.mxu0 0.0
        %984 = vmatpush1.xpose.msra.mxu0 %v639
        %985 = vmatprep.subr.mxu0 0.0
        %986 = vmatpush1.xpose.msra.mxu0 %v642
        %987 = vmatprep.subr.mxu0 0.0
        %988 = vmatpush1.xpose.msra.mxu0 %v645
        %989 = vmatprep.subr.mxu0 0.0
        %990 = vmatpush1.xpose.msra.mxu0 %v648
        %991 = vmatprep.subr.mxu0 0.0
        %992 = vmatpush1.xpose.msra.mxu0 %v651
        %993 = vmatprep.subr.mxu0 0.0
        %994 = vmatpush1.xpose.msra.mxu0 %v654
        %995 = vmatprep.subr.mxu0 0.0
        %996 = vmatpush1.xpose.msra.mxu0 %v657
        %997 = vmatprep.subr.mxu0 0.0
        %998 = vmatpush1.xpose.msra.mxu0 %v660
        %999 = vmatprep.subr.mxu0 0.0
        %1000 = vmatpush1.xpose.msra.mxu0 %v663
        %1001 = vmatprep.subr.mxu0 0.0
        %1002 = vmatpush1.xpose.msra.mxu0 %v666
        %1003 = vmatprep.subr.mxu0 0.0
        %1004 = vmatpush1.xpose.msra.mxu0 %v669
        %1005 = vmatprep.subr.mxu0 0.0
        %1006 = vmatpush1.xpose.msra.mxu0 %v672
        %1007 = vmatprep.subr.mxu0 0.0
        %1008 = vmatpush1.xpose.msra.mxu0 %v675
        %1009 = vmatprep.subr.mxu0 0.0
        %1010 = vmatpush1.xpose.msra.mxu0 %v678
        %1011 = vmatprep.subr.mxu0 0.0
        %1012 = vmatpush1.xpose.msra.mxu0 %v681
        %1013 = vmatprep.subr.mxu0 0.0
        %1014 = vmatpush1.xpose.msra.mxu0 %v684
        %1015 = vmatprep.subr.mxu0 0.0
        %1016 = vmatpush1.xpose.msra.mxu0 %v687
        %1017 = vmatprep.subr.mxu0 0.0
        %1018 = vmatpush1.xpose.msra.mxu0 %v690
        %1019 = vmatprep.subr.mxu0 0.0
        %1020 = vmatpush1.xpose.msra.mxu0 %v693
        %1021 = vmatprep.mubr.f32.mxu0 0.0
        %1022 = vmatmul.mubr.f32.gmra.mrb[0].mxu0 %v399
        %v1023 = vpop.f32.mrb[0].mxu0
        %v1024 = vadd.f32 %v385, %v1023
        %v1025 = vpop.f32.mrb[0].mxu0
        %v1026 = vadd.f32 %v385, %v1025
        %1027 = vmatprep.mubr.f32.mxu0 0.0
        %1028 = vmatmul.mubr.f32.gmra.mrb[0].mxu0 %v402
        %v1029 = vpop.f32.mrb[0].mxu0
        %v1030 = vadd.f32 %v390, %v1029
        %v1031 = vpop.f32.mrb[0].mxu0
        %v1032 = vadd.f32 %v390, %v1031
        %1033 = vmatprep.mubr.f32.mxu0 0.0
        %1034 = vmatmul.mubr.f32.gmra.mrb[0].mxu0 %v405
        %v1035 = vpop.f32.mrb[0].mxu0
        %v1036 = vadd.f32 %v395, %v1035
        %v1037 = vpop.f32.mrb[0].mxu0
        %v1038 = vadd.f32 %v395, %v1037
        %1039 = vdwg.mxu0
        %1040 = vmatprep.subr.mxu0 0.0
        %1041 = vmatpush1.xpose.msra.mxu0 %v696
        %1042 = vmatprep.subr.mxu0 0.0
        %1043 = vmatpush1.xpose.msra.mxu0 %v699
        %1044 = vmatprep.subr.mxu0 0.0
        %1045 = vmatpush1.xpose.msra.mxu0 %v702
        %1046 = vmatprep.subr.mxu0 0.0
        %1047 = vmatpush1.xpose.msra.mxu0 %v705
        %1048 = vmatprep.subr.mxu0 0.0
        %1049 = vmatpush1.xpose.msra.mxu0 %v708
        %1050 = vmatprep.subr.mxu0 0.0
        %1051 = vmatpush1.xpose.msra.mxu0 %v711
        %1052 = vmatprep.subr.mxu0 0.0
        %1053 = vmatpush1.xpose.msra.mxu0 %v714
        %1054 = vmatprep.subr.mxu0 0.0
        %1055 = vmatpush1.xpose.msra.mxu0 %v717
        %1056 = vmatprep.subr.mxu0 0.0
        %1057 = vmatpush1.xpose.msra.mxu0 %v720
        %1058 = vmatprep.subr.mxu0 0.0
        %1059 = vmatpush1.xpose.msra.mxu0 %v723
        %1060 = vmatprep.subr.mxu0 0.0
        %1061 = vmatpush1.xpose.msra.mxu0 %v726
        %1062 = vmatprep.subr.mxu0 0.0
        %1063 = vmatpush1.xpose.msra.mxu0 %v729
        %1064 = vmatprep.subr.mxu0 0.0
        %1065 = vmatpush1.xpose.msra.mxu0 %v732
        %1066 = vmatprep.subr.mxu0 0.0
        %1067 = vmatpush1.xpose.msra.mxu0 %v735
        %1068 = vmatprep.subr.mxu0 0.0
        %1069 = vmatpush1.xpose.msra.mxu0 %v738
        %1070 = vmatprep.subr.mxu0 0.0
        %1071 = vmatpush1.xpose.msra.mxu0 %v741
        %1072 = vmatprep.subr.mxu0 0.0
        %1073 = vmatpush1.xpose.msra.mxu0 %v744
        %1074 = vmatprep.subr.mxu0 0.0
        %1075 = vmatpush1.xpose.msra.mxu0 %v747
        %1076 = vmatprep.subr.mxu0 0.0
        %1077 = vmatpush1.xpose.msra.mxu0 %v750
        %1078 = vmatprep.subr.mxu0 0.0
        %1079 = vmatpush1.xpose.msra.mxu0 %v753
        %1080 = vmatprep.subr.mxu0 0.0
        %1081 = vmatpush1.xpose.msra.mxu0 %v756
        %1082 = vmatprep.subr.mxu0 0.0
        %1083 = vmatpush1.xpose.msra.mxu0 %v759
        %1084 = vmatprep.subr.mxu0 0.0
        %1085 = vmatpush1.xpose.msra.mxu0 %v762
        %1086 = vmatprep.subr.mxu0 0.0
        %1087 = vmatpush1.xpose.msra.mxu0 %v765
        %1088 = vmatprep.subr.mxu0 0.0
        %1089 = vmatpush1.xpose.msra.mxu0 %v768
        %1090 = vmatprep.subr.mxu0 0.0
        %1091 = vmatpush1.xpose.msra.mxu0 %v771
        %1092 = vmatprep.subr.mxu0 0.0
        %1093 = vmatpush1.xpose.msra.mxu0 %v774
        %1094 = vmatprep.subr.mxu0 0.0
        %1095 = vmatpush1.xpose.msra.mxu0 %v777
        %1096 = vmatprep.subr.mxu0 0.0
        %1097 = vmatpush1.xpose.msra.mxu0 %v780
        %1098 = vmatprep.subr.mxu0 0.0
        %1099 = vmatpush1.xpose.msra.mxu0 %v783
        %1100 = vmatprep.subr.mxu0 0.0
        %1101 = vmatpush1.xpose.msra.mxu0 %v786
        %1102 = vmatprep.subr.mxu0 0.0
        %1103 = vmatpush1.xpose.msra.mxu0 %v789
        %1104 = vmatprep.mubr.f32.mxu0 0.0
        %1105 = vmatmul.mubr.f32.gmra.mrb[0].mxu0 %v399
        %v1106 = vpop.f32.mrb[0].mxu0
        %v1107 = vadd.f32 %v385, %v1106
        %v1108 = vpop.f32.mrb[0].mxu0
        %v1109 = vadd.f32 %v385, %v1108
        %1110 = vmatprep.mubr.f32.mxu0 0.0
        %1111 = vmatmul.mubr.f32.gmra.mrb[0].mxu0 %v402
        %v1112 = vpop.f32.mrb[0].mxu0
        %v1113 = vadd.f32 %v390, %v1112
        %v1114 = vpop.f32.mrb[0].mxu0
        %v1115 = vadd.f32 %v390, %v1114
        %1116 = vmatprep.mubr.f32.mxu0 0.0
        %1117 = vmatmul.mubr.f32.gmra.mrb[0].mxu0 %v405
        %v1118 = vpop.f32.mrb[0].mxu0
        %v1119 = vadd.f32 %v395, %v1118
        %v1120 = vpop.f32.mrb[0].mxu0
        %v1121 = vadd.f32 %v395, %v1120
        %1122 = vdwg.mxu0
        %v1123 = vmax.f32 %v858, 0.0
        %v1124 = vmax.f32 %v860, 0.0
        %v1125 = vmax.f32 %v941, 0.0
        %v1126 = vmax.f32 %v943, 0.0
        %v1127 = vmax.f32 %v1024, 0.0
        %v1128 = vmax.f32 %v1026, 0.0
        %v1129 = vmax.f32 %v1107, 0.0
        %v1130 = vmax.f32 %v1109, 0.0
        %v1131 = vmax.f32 %v864, 0.0
        %v1132 = vmax.f32 %v866, 0.0
        %v1133 = vmax.f32 %v947, 0.0
        %v1134 = vmax.f32 %v949, 0.0
        %v1135 = vmax.f32 %v1030, 0.0
        %v1136 = vmax.f32 %v1032, 0.0
        %v1137 = vmax.f32 %v1113, 0.0
        %v1138 = vmax.f32 %v1115, 0.0
        %v1139 = vmax.f32 %v870, 0.0
        %v1140 = vmax.f32 %v872, 0.0
        %v1141 = vmax.f32 %v953, 0.0
        %v1142 = vmax.f32 %v955, 0.0
        %v1143 = vmax.f32 %v1036, 0.0
        %v1144 = vmax.f32 %v1038, 0.0
        %v1145 = vmax.f32 %v1119, 0.0
        %v1146 = vmax.f32 %v1121, 0.0
        %v1147 = vld [vmem:[%s3] sm:$0xff]
        %v1148 = vld [vmem:[%s3 + $0x8] sm:$0xff]
        %v1149 = vld [vmem:[%s3 + $0x10] sm:$0xff]
        %1151 = vset.pattern.permute.xlu0 0
        %1152 = vperm.xlu0 %1151, %v1147
        %v1153 = vpop.permute.xlu0 %1152
        %1156 = vset.pattern.permute.xlu0 0
        %1157 = vperm.xlu0 %1156, %v1148
        %v1158 = vpop.permute.xlu0 %1157
        %1161 = vset.pattern.permute.xlu0 0
        %1162 = vperm.xlu0 %1161, %v1149
        %v1163 = vpop.permute.xlu0 %1162
        %v1165 = vmul.f32 %v1123, %v1153
        %v1166 = vmul.f32 %v1124, %v1153
        %v1167 = vmul.f32 %v1125, %v1153
        %v1168 = vmul.f32 %v1126, %v1153
        %v1169 = vmul.f32 %v1127, %v1153
        %v1170 = vmul.f32 %v1128, %v1153
        %v1171 = vmul.f32 %v1129, %v1153
        %v1172 = vmul.f32 %v1130, %v1153
        %v1173 = vmul.f32 %v1131, %v1158
        %v1174 = vmul.f32 %v1132, %v1158
        %v1175 = vmul.f32 %v1133, %v1158
        %v1176 = vmul.f32 %v1134, %v1158
        %v1177 = vmul.f32 %v1135, %v1158
        %v1178 = vmul.f32 %v1136, %v1158
        %v1179 = vmul.f32 %v1137, %v1158
        %v1180 = vmul.f32 %v1138, %v1158
        %v1181 = vmul.f32 %v1139, %v1163
        %v1182 = vmul.f32 %v1140, %v1163
        %v1183 = vmul.f32 %v1141, %v1163
        %v1184 = vmul.f32 %v1142, %v1163
        %v1185 = vmul.f32 %v1143, %v1163
        %v1186 = vmul.f32 %v1144, %v1163
        %v1187 = vmul.f32 %v1145, %v1163
        %v1188 = vmul.f32 %v1146, %v1163
        %v1189 = vadd.f32 %v1165, %v1173
        %v1190 = vadd.f32 %v1189, %v1181
        %v1191 = vrot.slane %v1190, 4
        %v1192 = vadd.f32 %v1190, %v1191
        %v1193 = vrot.slane %v1192, 2
        %v1194 = vadd.f32 %v1192, %v1193
        %v1195 = vrot.slane %v1194, 1
        %v1196 = vadd.f32 %v1194, %v1195
        %v1197 = vadd.f32 %v1166, %v1174
        %v1198 = vadd.f32 %v1197, %v1182
        %v1199 = vrot.slane %v1198, 4
        %v1200 = vadd.f32 %v1198, %v1199
        %v1201 = vrot.slane %v1200, 2
        %v1202 = vadd.f32 %v1200, %v1201
        %v1203 = vrot.slane %v1202, 1
        %v1204 = vadd.f32 %v1202, %v1203
        %v1205 = vadd.f32 %v1167, %v1175
        %v1206 = vadd.f32 %v1205, %v1183
        %v1207 = vrot.slane %v1206, 4
        %v1208 = vadd.f32 %v1206, %v1207
        %v1209 = vrot.slane %v1208, 2
        %v1210 = vadd.f32 %v1208, %v1209
        %v1211 = vrot.slane %v1210, 1
        %v1212 = vadd.f32 %v1210, %v1211
        %v1213 = vadd.f32 %v1168, %v1176
        %v1214 = vadd.f32 %v1213, %v1184
        %v1215 = vrot.slane %v1214, 4
        %v1216 = vadd.f32 %v1214, %v1215
        %v1217 = vrot.slane %v1216, 2
        %v1218 = vadd.f32 %v1216, %v1217
        %v1219 = vrot.slane %v1218, 1
        %v1220 = vadd.f32 %v1218, %v1219
        %v1221 = vadd.f32 %v1169, %v1177
        %v1222 = vadd.f32 %v1221, %v1185
        %v1223 = vrot.slane %v1222, 4
        %v1224 = vadd.f32 %v1222, %v1223
        %v1225 = vrot.slane %v1224, 2
        %v1226 = vadd.f32 %v1224, %v1225
        %v1227 = vrot.slane %v1226, 1
        %v1228 = vadd.f32 %v1226, %v1227
        %v1229 = vadd.f32 %v1170, %v1178
        %v1230 = vadd.f32 %v1229, %v1186
        %v1231 = vrot.slane %v1230, 4
        %v1232 = vadd.f32 %v1230, %v1231
        %v1233 = vrot.slane %v1232, 2
        %v1234 = vadd.f32 %v1232, %v1233
        %v1235 = vrot.slane %v1234, 1
        %v1236 = vadd.f32 %v1234, %v1235
        %v1237 = vadd.f32 %v1171, %v1179
        %v1238 = vadd.f32 %v1237, %v1187
        %v1239 = vrot.slane %v1238, 4
        %v1240 = vadd.f32 %v1238, %v1239
        %v1241 = vrot.slane %v1240, 2
        %v1242 = vadd.f32 %v1240, %v1241
        %v1243 = vrot.slane %v1242, 1
        %v1244 = vadd.f32 %v1242, %v1243
        %v1245 = vadd.f32 %v1172, %v1180
        %v1246 = vadd.f32 %v1245, %v1188
        %v1247 = vrot.slane %v1246, 4
        %v1248 = vadd.f32 %v1246, %v1247
        %v1249 = vrot.slane %v1248, 2
        %v1250 = vadd.f32 %v1248, %v1249
        %v1251 = vrot.slane %v1250, 1
        %v1252 = vadd.f32 %v1250, %v1251
        %v1253 = vld [vmem:[#allocation2] sm:$0x1]
        %1255 = vset.pattern.permute.xlu0 0
        %1256 = vperm.xlu0 %1255, %v1253
        %v1257 = vpop.permute.xlu0 %1256
        %v1259 = vlaneseq
        %v1260 = vshrl.u32 %v1259, 7
        %v1261 = vsub.s32 0, %v1260
        %v1262 = vrot.slane %v1257, %v1261
        %v1263 = vadd.f32 %v1196, %v1262
        %v1264 = vadd.f32 %v1204, %v1262
        %v1265 = vadd.f32 %v1212, %v1262
        %v1266 = vadd.f32 %v1220, %v1262
        %v1267 = vadd.f32 %v1228, %v1262
        %v1268 = vadd.f32 %v1236, %v1262
        %v1269 = vadd.f32 %v1244, %v1262
        %v1270 = vadd.f32 %v1252, %v1262
        %v1279 = vcombine.low %v1263, %v1264
        %v1280 = vcombine.low %v1265, %v1266
        %v1281 = vcombine.low %v1267, %v1268
        %v1282 = vcombine.low %v1269, %v1270
        %v1284 = vunpack.c.l.s4 1966171168
        %v1285 = vunpack.c.0.s8 %v1284
        %v1286 = vlaneseq
        %v1287 = vshrl.u32 %v1286, 7
        %v1288 = vsub.s32 %v1285, %v1287
        %v1289 = vrot.slane %v1279, %v1288
        %v1291 = vunpack.c.l.s4 1966171168
        %v1292 = vunpack.c.0.s8 %v1291
        %v1293 = vlaneseq
        %v1294 = vshrl.u32 %v1293, 7
        %v1295 = vsub.s32 %v1292, %v1294
        %v1296 = vrot.slane %v1280, %v1295
        %v1298 = vunpack.c.l.s4 1966171168
        %v1299 = vunpack.c.0.s8 %v1298
        %v1300 = vlaneseq
        %v1301 = vshrl.u32 %v1300, 7
        %v1302 = vsub.s32 %v1299, %v1301
        %v1303 = vrot.slane %v1281, %v1302
        %v1305 = vunpack.c.l.s4 1966171168
        %v1306 = vunpack.c.0.s8 %v1305
        %v1307 = vlaneseq
        %v1308 = vshrl.u32 %v1307, 7
        %v1309 = vsub.s32 %v1306, %v1308
        %v1310 = vrot.slane %v1282, %v1309
        %v1311 = vcombine.low %v1289, %v1296
        %v1312 = vcombine.low %v1303, %v1310
        %v1314 = vunpack.c.l.s4 1966171168
        %v1315 = vunpack.c.0.s8 %v1314
        %v1316 = vlaneseq
        %v1317 = vshrl.u32 %v1316, 7
        %v1318 = vsub.s32 %v1315, %v1317
        %v1319 = vrot.slane %v1311, %v1318
        %v1321 = vunpack.c.l.s4 1966171168
        %v1322 = vunpack.c.0.s8 %v1321
        %v1323 = vlaneseq
        %v1324 = vshrl.u32 %v1323, 7
        %v1325 = vsub.s32 %v1322, %v1324
        %v1326 = vrot.slane %v1312, %v1325
        %v1327 = vcombine.low %v1319, %v1326
        %1329 = vst [vmem:[%s228] sm:$0xff] %v1327
        %s1330 = sand.u32 %s136, 1
        %s1331 = sand.u32 %s136, 1
        %s1332 = smul.addr %s1331, 8
        %s1333 = scalar_lea.vmem [#allocation3], %s1332
        // Predicated region
        $region41: #{decoder_forward.1} parent=39 // pred_check
          %p1334 = pneg %p146
        $region42: #{decoder_forward.1} parent=39 // pred_check_branch
          %1336 = sbr.rel (%p1334) target = $region44
        $region43: #{decoder_forward.1} parent=39 // pred_region
          %s1337 = smul.u32 8, %s18
          %s1338 = ssub.s32 13, %s1337
          %p1339 = scmp.lt.s32.totalorder %s1338, 8
          %s1340 = scalar_select %p1339, %s1338, 8
          %s1341 = smul.u32 16, %s1340
          %p1342 = scmp.ne.s32.totalorder 0, %s1341
          %s1343 = scalar_lea.vmem %s5, %s1337
          // Predicated region
          $region45: #{decoder_forward.1} parent=43 // pred_check
            %p1344 = pneg %p1342
          $region46: #{decoder_forward.1} parent=43 // pred_check_branch
            %1346 = sbr.rel (%p1344) target = $region48
          $region47: #{decoder_forward.1} parent=43 // pred_region
            %p1347 = scmp.lt.u32.totalorder %s1340, 8
            %p1348 = pneg %p1347
            // Predicated region
            $region49: #{decoder_forward.1} parent=47 // pred_check
              _
            $region50: #{decoder_forward.1} parent=47 // pred_check_branch
              %1350 = sbr.rel (%p1347) target = $region52
            $region51: #{decoder_forward.1} parent=47 // pred_region
              %s1365 = sand.u32 %s1340, 7
              %p1366 = scmp.eq.s32.totalorder %s1365, 0
              // Predicated region
              $region64: #{decoder_forward.1} parent=51 // pred_check
                %p1367 = pneg %p1366
              $region65: #{decoder_forward.1} parent=51 // pred_check_branch
                %1369 = sbr.rel (%p1367) target = $region67
              $region66: #{decoder_forward.1} parent=51 // pred_region
                %s1370 = sshrl.u32 %s1340, 3
                %s1371 = sshrl.u32 %s1370, 6
                // While loop
                $region68: #{decoder_forward.1} parent=66 // loop_pre_header
                  _
                $region69: #{decoder_forward.1} parent=66 // loop_header
                  %s1375 = sphi 0, %s1377
                  %p1376 = scmp.ge.s32.totalorder %s1375, %s1371
                  %s1380 = sphi 0, %s1513
                  %s1381 = sphi %s1333, %s1516
                  %s1382 = sphi %s1343, %s1517
                $region70: #{decoder_forward.1} parent=66 // loop_header_branch
                  %1379 = sbr.rel (%p1376) target = $region74
                $region71: #{decoder_forward.1} parent=66 // loop_body
                  %v1383 = vld [vmem:[%s1381] sm:$0xff]
                  %1384 = vst [vmem:[%s1382] sm:$0xff] %v1383
                  %v1385 = vld [vmem:[%s1381 + $0x8] sm:$0xff]
                  %1386 = vst [vmem:[%s1382 + $0x8] sm:$0xff] %v1385
                  %v1387 = vld [vmem:[%s1381 + $0x10] sm:$0xff]
                  %1388 = vst [vmem:[%s1382 + $0x10] sm:$0xff] %v1387
                  %v1389 = vld [vmem:[%s1381 + $0x18] sm:$0xff]
                  %1390 = vst [vmem:[%s1382 + $0x18] sm:$0xff] %v1389
                  %v1391 = vld [vmem:[%s1381 + $0x20] sm:$0xff]
                  %1392 = vst [vmem:[%s1382 + $0x20] sm:$0xff] %v1391
                  %v1393 = vld [vmem:[%s1381 + $0x28] sm:$0xff]
                  %1394 = vst [vmem:[%s1382 + $0x28] sm:$0xff] %v1393
                  %v1395 = vld [vmem:[%s1381 + $0x30] sm:$0xff]
                  %1396 = vst [vmem:[%s1382 + $0x30] sm:$0xff] %v1395
                  %v1397 = vld [vmem:[%s1381 + $0x38] sm:$0xff]
                  %1398 = vst [vmem:[%s1382 + $0x38] sm:$0xff] %v1397
                  %v1399 = vld [vmem:[%s1381 + $0x40] sm:$0xff]
                  %1400 = vst [vmem:[%s1382 + $0x40] sm:$0xff] %v1399
                  %v1401 = vld [vmem:[%s1381 + $0x48] sm:$0xff]
                  %1402 = vst [vmem:[%s1382 + $0x48] sm:$0xff] %v1401
                  %v1403 = vld [vmem:[%s1381 + $0x50] sm:$0xff]
                  %1404 = vst [vmem:[%s1382 + $0x50] sm:$0xff] %v1403
                  %v1405 = vld [vmem:[%s1381 + $0x58] sm:$0xff]
                  %1406 = vst [vmem:[%s1382 + $0x58] sm:$0xff] %v1405
                  %v1407 = vld [vmem:[%s1381 + $0x60] sm:$0xff]
                  %1408 = vst [vmem:[%s1382 + $0x60] sm:$0xff] %v1407
                  %v1409 = vld [vmem:[%s1381 + $0x68] sm:$0xff]
                  %1410 = vst [vmem:[%s1382 + $0x68] sm:$0xff] %v1409
                  %v1411 = vld [vmem:[%s1381 + $0x70] sm:$0xff]
                  %1412 = vst [vmem:[%s1382 + $0x70] sm:$0xff] %v1411
                  %v1413 = vld [vmem:[%s1381 + $0x78] sm:$0xff]
                  %1414 = vst [vmem:[%s1382 + $0x78] sm:$0xff] %v1413
                  %v1415 = vld [vmem:[%s1381 + $0x80] sm:$0xff]
                  %1416 = vst [vmem:[%s1382 + $0x80] sm:$0xff] %v1415
                  %v1417 = vld [vmem:[%s1381 + $0x88] sm:$0xff]
                  %1418 = vst [vmem:[%s1382 + $0x88] sm:$0xff] %v1417
                  %v1419 = vld [vmem:[%s1381 + $0x90] sm:$0xff]
                  %1420 = vst [vmem:[%s1382 + $0x90] sm:$0xff] %v1419
                  %v1421 = vld [vmem:[%s1381 + $0x98] sm:$0xff]
                  %1422 = vst [vmem:[%s1382 + $0x98] sm:$0xff] %v1421
                  %v1423 = vld [vmem:[%s1381 + $0xa0] sm:$0xff]
                  %1424 = vst [vmem:[%s1382 + $0xa0] sm:$0xff] %v1423
                  %v1425 = vld [vmem:[%s1381 + $0xa8] sm:$0xff]
                  %1426 = vst [vmem:[%s1382 + $0xa8] sm:$0xff] %v1425
                  %v1427 = vld [vmem:[%s1381 + $0xb0] sm:$0xff]
                  %1428 = vst [vmem:[%s1382 + $0xb0] sm:$0xff] %v1427
                  %v1429 = vld [vmem:[%s1381 + $0xb8] sm:$0xff]
                  %1430 = vst [vmem:[%s1382 + $0xb8] sm:$0xff] %v1429
                  %v1431 = vld [vmem:[%s1381 + $0xc0] sm:$0xff]
                  %1432 = vst [vmem:[%s1382 + $0xc0] sm:$0xff] %v1431
                  %v1433 = vld [vmem:[%s1381 + $0xc8] sm:$0xff]
                  %1434 = vst [vmem:[%s1382 + $0xc8] sm:$0xff] %v1433
                  %v1435 = vld [vmem:[%s1381 + $0xd0] sm:$0xff]
                  %1436 = vst [vmem:[%s1382 + $0xd0] sm:$0xff] %v1435
                  %v1437 = vld [vmem:[%s1381 + $0xd8] sm:$0xff]
                  %1438 = vst [vmem:[%s1382 + $0xd8] sm:$0xff] %v1437
                  %v1439 = vld [vmem:[%s1381 + $0xe0] sm:$0xff]
                  %1440 = vst [vmem:[%s1382 + $0xe0] sm:$0xff] %v1439
                  %v1441 = vld [vmem:[%s1381 + $0xe8] sm:$0xff]
                  %1442 = vst [vmem:[%s1382 + $0xe8] sm:$0xff] %v1441
                  %v1443 = vld [vmem:[%s1381 + $0xf0] sm:$0xff]
                  %1444 = vst [vmem:[%s1382 + $0xf0] sm:$0xff] %v1443
                  %v1445 = vld [vmem:[%s1381 + $0xf8] sm:$0xff]
                  %1446 = vst [vmem:[%s1382 + $0xf8] sm:$0xff] %v1445
                  %v1447 = vld [vmem:[%s1381 + $0x100] sm:$0xff]
                  %1448 = vst [vmem:[%s1382 + $0x100] sm:$0xff] %v1447
                  %v1449 = vld [vmem:[%s1381 + $0x108] sm:$0xff]
                  %1450 = vst [vmem:[%s1382 + $0x108] sm:$0xff] %v1449
                  %v1451 = vld [vmem:[%s1381 + $0x110] sm:$0xff]
                  %1452 = vst [vmem:[%s1382 + $0x110] sm:$0xff] %v1451
                  %v1453 = vld [vmem:[%s1381 + $0x118] sm:$0xff]
                  %1454 = vst [vmem:[%s1382 + $0x118] sm:$0xff] %v1453
                  %v1455 = vld [vmem:[%s1381 + $0x120] sm:$0xff]
                  %1456 = vst [vmem:[%s1382 + $0x120] sm:$0xff] %v1455
                  %v1457 = vld [vmem:[%s1381 + $0x128] sm:$0xff]
                  %1458 = vst [vmem:[%s1382 + $0x128] sm:$0xff] %v1457
                  %v1459 = vld [vmem:[%s1381 + $0x130] sm:$0xff]
                  %1460 = vst [vmem:[%s1382 + $0x130] sm:$0xff] %v1459
                  %v1461 = vld [vmem:[%s1381 + $0x138] sm:$0xff]
                  %1462 = vst [vmem:[%s1382 + $0x138] sm:$0xff] %v1461
                  %v1463 = vld [vmem:[%s1381 + $0x140] sm:$0xff]
                  %1464 = vst [vmem:[%s1382 + $0x140] sm:$0xff] %v1463
                  %v1465 = vld [vmem:[%s1381 + $0x148] sm:$0xff]
                  %1466 = vst [vmem:[%s1382 + $0x148] sm:$0xff] %v1465
                  %v1467 = vld [vmem:[%s1381 + $0x150] sm:$0xff]
                  %1468 = vst [vmem:[%s1382 + $0x150] sm:$0xff] %v1467
                  %v1469 = vld [vmem:[%s1381 + $0x158] sm:$0xff]
                  %1470 = vst [vmem:[%s1382 + $0x158] sm:$0xff] %v1469
                  %v1471 = vld [vmem:[%s1381 + $0x160] sm:$0xff]
                  %1472 = vst [vmem:[%s1382 + $0x160] sm:$0xff] %v1471
                  %v1473 = vld [vmem:[%s1381 + $0x168] sm:$0xff]
                  %1474 = vst [vmem:[%s1382 + $0x168] sm:$0xff] %v1473
                  %v1475 = vld [vmem:[%s1381 + $0x170] sm:$0xff]
                  %1476 = vst [vmem:[%s1382 + $0x170] sm:$0xff] %v1475
                  %v1477 = vld [vmem:[%s1381 + $0x178] sm:$0xff]
                  %1478 = vst [vmem:[%s1382 + $0x178] sm:$0xff] %v1477
                  %v1479 = vld [vmem:[%s1381 + $0x180] sm:$0xff]
                  %1480 = vst [vmem:[%s1382 + $0x180] sm:$0xff] %v1479
                  %v1481 = vld [vmem:[%s1381 + $0x188] sm:$0xff]
                  %1482 = vst [vmem:[%s1382 + $0x188] sm:$0xff] %v1481
                  %v1483 = vld [vmem:[%s1381 + $0x190] sm:$0xff]
                  %1484 = vst [vmem:[%s1382 + $0x190] sm:$0xff] %v1483
                  %v1485 = vld [vmem:[%s1381 + $0x198] sm:$0xff]
                  %1486 = vst [vmem:[%s1382 + $0x198] sm:$0xff] %v1485
                  %v1487 = vld [vmem:[%s1381 + $0x1a0] sm:$0xff]
                  %1488 = vst [vmem:[%s1382 + $0x1a0] sm:$0xff] %v1487
                  %v1489 = vld [vmem:[%s1381 + $0x1a8] sm:$0xff]
                  %1490 = vst [vmem:[%s1382 + $0x1a8] sm:$0xff] %v1489
                  %v1491 = vld [vmem:[%s1381 + $0x1b0] sm:$0xff]
                  %1492 = vst [vmem:[%s1382 + $0x1b0] sm:$0xff] %v1491
                  %v1493 = vld [vmem:[%s1381 + $0x1b8] sm:$0xff]
                  %1494 = vst [vmem:[%s1382 + $0x1b8] sm:$0xff] %v1493
                  %v1495 = vld [vmem:[%s1381 + $0x1c0] sm:$0xff]
                  %1496 = vst [vmem:[%s1382 + $0x1c0] sm:$0xff] %v1495
                  %v1497 = vld [vmem:[%s1381 + $0x1c8] sm:$0xff]
                  %1498 = vst [vmem:[%s1382 + $0x1c8] sm:$0xff] %v1497
                  %v1499 = vld [vmem:[%s1381 + $0x1d0] sm:$0xff]
                  %1500 = vst [vmem:[%s1382 + $0x1d0] sm:$0xff] %v1499
                  %v1501 = vld [vmem:[%s1381 + $0x1d8] sm:$0xff]
                  %1502 = vst [vmem:[%s1382 + $0x1d8] sm:$0xff] %v1501
                  %v1503 = vld [vmem:[%s1381 + $0x1e0] sm:$0xff]
                  %1504 = vst [vmem:[%s1382 + $0x1e0] sm:$0xff] %v1503
                  %v1505 = vld [vmem:[%s1381 + $0x1e8] sm:$0xff]
                  %1506 = vst [vmem:[%s1382 + $0x1e8] sm:$0xff] %v1505
                  %v1507 = vld [vmem:[%s1381 + $0x1f0] sm:$0xff]
                  %1508 = vst [vmem:[%s1382 + $0x1f0] sm:$0xff] %v1507
                  %v1509 = vld [vmem:[%s1381 + $0x1f8] sm:$0xff]
                  %1510 = vst [vmem:[%s1382 + $0x1f8] sm:$0xff] %v1509
                  %s1511 = sadd.s32 1, %s1380
                  %p1512 = scmp.ge.s32.totalorder %s1511, %s1371
                  %s1513 = scalar_select %p1512, 0, %s1511
                  %s1514 = smul.u32 %s1513, 512
                  %s1515 = smul.u32 %s1513, 512
                  %s1516 = scalar_lea.vmem %s1333, %s1514 [#allocation3]
                  %s1517 = scalar_lea.vmem %s1343, %s1515
                $region72: #{decoder_forward.1} parent=66 // loop_footer
                  %s1377 = sadd.s32 %s1375, 1
                $region73: #{decoder_forward.1} parent=66 // loop_footer_branch
                  %1374 = sbr.rel target = $region69
                $region74: #{decoder_forward.1} parent=66 // loop_exit
                  _
                %s1518 = sshrl.u32 %s1370, 6
                %s1519 = sand.u32 %s1370, 63
                %s1520 = smul.u32 %s1518, 64
                %s1521 = smul.u32 128, %s1520
                %s1522 = sshra.s32 %s1521, 4
                %s1523 = scalar_lea.vmem %s1333, %s1522 [#allocation3]
                %s1524 = smul.u32 128, %s1520
                %s1525 = sshra.s32 %s1524, 4
                %s1526 = scalar_lea.vmem %s1343, %s1525
                // While loop
                $region75: #{decoder_forward.1} parent=66 // loop_pre_header
                  _
                $region76: #{decoder_forward.1} parent=66 // loop_header
                  %s1530 = sphi 0, %s1532
                  %p1531 = scmp.ge.s32.totalorder %s1530, %s1519
                  %s1535 = sphi 0, %s1542
                  %s1536 = sphi %s1523, %s1545
                  %s1537 = sphi %s1526, %s1546
                $region77: #{decoder_forward.1} parent=66 // loop_header_branch
                  %1534 = sbr.rel (%p1531) target = $region81
                $region78: #{decoder_forward.1} parent=66 // loop_body
                  %v1538 = vld [vmem:[%s1536] sm:$0xff]
                  %1539 = vst [vmem:[%s1537] sm:$0xff] %v1538
                  %s1540 = sadd.s32 1, %s1535
                  %p1541 = scmp.ge.s32.totalorder %s1540, %s1519
                  %s1542 = scalar_select %p1541, 0, %s1540
                  %s1543 = smul.u32 %s1542, 8
                  %s1544 = smul.u32 %s1542, 8
                  %s1545 = scalar_lea.vmem %s1523, %s1543 [#allocation3]
                  %s1546 = scalar_lea.vmem %s1526, %s1544
                $region79: #{decoder_forward.1} parent=66 // loop_footer
                  %s1532 = sadd.s32 %s1530, 1
                $region80: #{decoder_forward.1} parent=66 // loop_footer_branch
                  %1529 = sbr.rel target = $region76
                $region81: #{decoder_forward.1} parent=66 // loop_exit
                  _
              $region67: #{decoder_forward.1} parent=51 // pred_fallthru
                _
              %p1547 = pneg %p1366
              // Predicated region
              $region82: #{decoder_forward.1} parent=51 // pred_check
                _
              $region83: #{decoder_forward.1} parent=51 // pred_check_branch
                %1549 = sbr.rel (%p1366) target = $region85
              $region84: #{decoder_forward.1} parent=51 // pred_region
                %s1550 = sand.u32 %s1340, 7
                %s1551 = ssub.s32 %s1340, %s1550
                %s1552 = scalar_lea.vmem %s1333, %s1551 [#allocation3]
                %s1553 = ssub.s32 %s1340, %s1550
                %s1554 = scalar_lea.vmem %s1343, %s1553
                %s1555 = sshrl.u32 %s1340, 3
                %s1556 = sshrl.u32 %s1555, 6
                // While loop
                $region86: #{decoder_forward.1} parent=84 // loop_pre_header
                  _
                $region87: #{decoder_forward.1} parent=84 // loop_header
                  %s1560 = sphi 0, %s1562
                  %p1561 = scmp.ge.s32.totalorder %s1560, %s1556
                  %s1565 = sphi 0, %s1698
                  %s1566 = sphi %s1333, %s1701
                  %s1567 = sphi %s1343, %s1702
                $region88: #{decoder_forward.1} parent=84 // loop_header_branch
                  %1564 = sbr.rel (%p1561) target = $region92
                $region89: #{decoder_forward.1} parent=84 // loop_body
                  %v1568 = vld [vmem:[%s1566] sm:$0xff]
                  %1569 = vst [vmem:[%s1567] sm:$0xff] %v1568
                  %v1570 = vld [vmem:[%s1566 + $0x8] sm:$0xff]
                  %1571 = vst [vmem:[%s1567 + $0x8] sm:$0xff] %v1570
                  %v1572 = vld [vmem:[%s1566 + $0x10] sm:$0xff]
                  %1573 = vst [vmem:[%s1567 + $0x10] sm:$0xff] %v1572
                  %v1574 = vld [vmem:[%s1566 + $0x18] sm:$0xff]
                  %1575 = vst [vmem:[%s1567 + $0x18] sm:$0xff] %v1574
                  %v1576 = vld [vmem:[%s1566 + $0x20] sm:$0xff]
                  %1577 = vst [vmem:[%s1567 + $0x20] sm:$0xff] %v1576
                  %v1578 = vld [vmem:[%s1566 + $0x28] sm:$0xff]
                  %1579 = vst [vmem:[%s1567 + $0x28] sm:$0xff] %v1578
                  %v1580 = vld [vmem:[%s1566 + $0x30] sm:$0xff]
                  %1581 = vst [vmem:[%s1567 + $0x30] sm:$0xff] %v1580
                  %v1582 = vld [vmem:[%s1566 + $0x38] sm:$0xff]
                  %1583 = vst [vmem:[%s1567 + $0x38] sm:$0xff] %v1582
                  %v1584 = vld [vmem:[%s1566 + $0x40] sm:$0xff]
                  %1585 = vst [vmem:[%s1567 + $0x40] sm:$0xff] %v1584
                  %v1586 = vld [vmem:[%s1566 + $0x48] sm:$0xff]
                  %1587 = vst [vmem:[%s1567 + $0x48] sm:$0xff] %v1586
                  %v1588 = vld [vmem:[%s1566 + $0x50] sm:$0xff]
                  %1589 = vst [vmem:[%s1567 + $0x50] sm:$0xff] %v1588
                  %v1590 = vld [vmem:[%s1566 + $0x58] sm:$0xff]
                  %1591 = vst [vmem:[%s1567 + $0x58] sm:$0xff] %v1590
                  %v1592 = vld [vmem:[%s1566 + $0x60] sm:$0xff]
                  %1593 = vst [vmem:[%s1567 + $0x60] sm:$0xff] %v1592
                  %v1594 = vld [vmem:[%s1566 + $0x68] sm:$0xff]
                  %1595 = vst [vmem:[%s1567 + $0x68] sm:$0xff] %v1594
                  %v1596 = vld [vmem:[%s1566 + $0x70] sm:$0xff]
                  %1597 = vst [vmem:[%s1567 + $0x70] sm:$0xff] %v1596
                  %v1598 = vld [vmem:[%s1566 + $0x78] sm:$0xff]
                  %1599 = vst [vmem:[%s1567 + $0x78] sm:$0xff] %v1598
                  %v1600 = vld [vmem:[%s1566 + $0x80] sm:$0xff]
                  %1601 = vst [vmem:[%s1567 + $0x80] sm:$0xff] %v1600
                  %v1602 = vld [vmem:[%s1566 + $0x88] sm:$0xff]
                  %1603 = vst [vmem:[%s1567 + $0x88] sm:$0xff] %v1602
                  %v1604 = vld [vmem:[%s1566 + $0x90] sm:$0xff]
                  %1605 = vst [vmem:[%s1567 + $0x90] sm:$0xff] %v1604
                  %v1606 = vld [vmem:[%s1566 + $0x98] sm:$0xff]
                  %1607 = vst [vmem:[%s1567 + $0x98] sm:$0xff] %v1606
                  %v1608 = vld [vmem:[%s1566 + $0xa0] sm:$0xff]
                  %1609 = vst [vmem:[%s1567 + $0xa0] sm:$0xff] %v1608
                  %v1610 = vld [vmem:[%s1566 + $0xa8] sm:$0xff]
                  %1611 = vst [vmem:[%s1567 + $0xa8] sm:$0xff] %v1610
                  %v1612 = vld [vmem:[%s1566 + $0xb0] sm:$0xff]
                  %1613 = vst [vmem:[%s1567 + $0xb0] sm:$0xff] %v1612
                  %v1614 = vld [vmem:[%s1566 + $0xb8] sm:$0xff]
                  %1615 = vst [vmem:[%s1567 + $0xb8] sm:$0xff] %v1614
                  %v1616 = vld [vmem:[%s1566 + $0xc0] sm:$0xff]
                  %1617 = vst [vmem:[%s1567 + $0xc0] sm:$0xff] %v1616
                  %v1618 = vld [vmem:[%s1566 + $0xc8] sm:$0xff]
                  %1619 = vst [vmem:[%s1567 + $0xc8] sm:$0xff] %v1618
                  %v1620 = vld [vmem:[%s1566 + $0xd0] sm:$0xff]
                  %1621 = vst [vmem:[%s1567 + $0xd0] sm:$0xff] %v1620
                  %v1622 = vld [vmem:[%s1566 + $0xd8] sm:$0xff]
                  %1623 = vst [vmem:[%s1567 + $0xd8] sm:$0xff] %v1622
                  %v1624 = vld [vmem:[%s1566 + $0xe0] sm:$0xff]
                  %1625 = vst [vmem:[%s1567 + $0xe0] sm:$0xff] %v1624
                  %v1626 = vld [vmem:[%s1566 + $0xe8] sm:$0xff]
                  %1627 = vst [vmem:[%s1567 + $0xe8] sm:$0xff] %v1626
                  %v1628 = vld [vmem:[%s1566 + $0xf0] sm:$0xff]
                  %1629 = vst [vmem:[%s1567 + $0xf0] sm:$0xff] %v1628
                  %v1630 = vld [vmem:[%s1566 + $0xf8] sm:$0xff]
                  %1631 = vst [vmem:[%s1567 + $0xf8] sm:$0xff] %v1630
                  %v1632 = vld [vmem:[%s1566 + $0x100] sm:$0xff]
                  %1633 = vst [vmem:[%s1567 + $0x100] sm:$0xff] %v1632
                  %v1634 = vld [vmem:[%s1566 + $0x108] sm:$0xff]
                  %1635 = vst [vmem:[%s1567 + $0x108] sm:$0xff] %v1634
                  %v1636 = vld [vmem:[%s1566 + $0x110] sm:$0xff]
                  %1637 = vst [vmem:[%s1567 + $0x110] sm:$0xff] %v1636
                  %v1638 = vld [vmem:[%s1566 + $0x118] sm:$0xff]
                  %1639 = vst [vmem:[%s1567 + $0x118] sm:$0xff] %v1638
                  %v1640 = vld [vmem:[%s1566 + $0x120] sm:$0xff]
                  %1641 = vst [vmem:[%s1567 + $0x120] sm:$0xff] %v1640
                  %v1642 = vld [vmem:[%s1566 + $0x128] sm:$0xff]
                  %1643 = vst [vmem:[%s1567 + $0x128] sm:$0xff] %v1642
                  %v1644 = vld [vmem:[%s1566 + $0x130] sm:$0xff]
                  %1645 = vst [vmem:[%s1567 + $0x130] sm:$0xff] %v1644
                  %v1646 = vld [vmem:[%s1566 + $0x138] sm:$0xff]
                  %1647 = vst [vmem:[%s1567 + $0x138] sm:$0xff] %v1646
                  %v1648 = vld [vmem:[%s1566 + $0x140] sm:$0xff]
                  %1649 = vst [vmem:[%s1567 + $0x140] sm:$0xff] %v1648
                  %v1650 = vld [vmem:[%s1566 + $0x148] sm:$0xff]
                  %1651 = vst [vmem:[%s1567 + $0x148] sm:$0xff] %v1650
                  %v1652 = vld [vmem:[%s1566 + $0x150] sm:$0xff]
                  %1653 = vst [vmem:[%s1567 + $0x150] sm:$0xff] %v1652
                  %v1654 = vld [vmem:[%s1566 + $0x158] sm:$0xff]
                  %1655 = vst [vmem:[%s1567 + $0x158] sm:$0xff] %v1654
                  %v1656 = vld [vmem:[%s1566 + $0x160] sm:$0xff]
                  %1657 = vst [vmem:[%s1567 + $0x160] sm:$0xff] %v1656
                  %v1658 = vld [vmem:[%s1566 + $0x168] sm:$0xff]
                  %1659 = vst [vmem:[%s1567 + $0x168] sm:$0xff] %v1658
                  %v1660 = vld [vmem:[%s1566 + $0x170] sm:$0xff]
                  %1661 = vst [vmem:[%s1567 + $0x170] sm:$0xff] %v1660
                  %v1662 = vld [vmem:[%s1566 + $0x178] sm:$0xff]
                  %1663 = vst [vmem:[%s1567 + $0x178] sm:$0xff] %v1662
                  %v1664 = vld [vmem:[%s1566 + $0x180] sm:$0xff]
                  %1665 = vst [vmem:[%s1567 + $0x180] sm:$0xff] %v1664
                  %v1666 = vld [vmem:[%s1566 + $0x188] sm:$0xff]
                  %1667 = vst [vmem:[%s1567 + $0x188] sm:$0xff] %v1666
                  %v1668 = vld [vmem:[%s1566 + $0x190] sm:$0xff]
                  %1669 = vst [vmem:[%s1567 + $0x190] sm:$0xff] %v1668
                  %v1670 = vld [vmem:[%s1566 + $0x198] sm:$0xff]
                  %1671 = vst [vmem:[%s1567 + $0x198] sm:$0xff] %v1670
                  %v1672 = vld [vmem:[%s1566 + $0x1a0] sm:$0xff]
                  %1673 = vst [vmem:[%s1567 + $0x1a0] sm:$0xff] %v1672
                  %v1674 = vld [vmem:[%s1566 + $0x1a8] sm:$0xff]
                  %1675 = vst [vmem:[%s1567 + $0x1a8] sm:$0xff] %v1674
                  %v1676 = vld [vmem:[%s1566 + $0x1b0] sm:$0xff]
                  %1677 = vst [vmem:[%s1567 + $0x1b0] sm:$0xff] %v1676
                  %v1678 = vld [vmem:[%s1566 + $0x1b8] sm:$0xff]
                  %1679 = vst [vmem:[%s1567 + $0x1b8] sm:$0xff] %v1678
                  %v1680 = vld [vmem:[%s1566 + $0x1c0] sm:$0xff]
                  %1681 = vst [vmem:[%s1567 + $0x1c0] sm:$0xff] %v1680
                  %v1682 = vld [vmem:[%s1566 + $0x1c8] sm:$0xff]
                  %1683 = vst [vmem:[%s1567 + $0x1c8] sm:$0xff] %v1682
                  %v1684 = vld [vmem:[%s1566 + $0x1d0] sm:$0xff]
                  %1685 = vst [vmem:[%s1567 + $0x1d0] sm:$0xff] %v1684
                  %v1686 = vld [vmem:[%s1566 + $0x1d8] sm:$0xff]
                  %1687 = vst [vmem:[%s1567 + $0x1d8] sm:$0xff] %v1686
                  %v1688 = vld [vmem:[%s1566 + $0x1e0] sm:$0xff]
                  %1689 = vst [vmem:[%s1567 + $0x1e0] sm:$0xff] %v1688
                  %v1690 = vld [vmem:[%s1566 + $0x1e8] sm:$0xff]
                  %1691 = vst [vmem:[%s1567 + $0x1e8] sm:$0xff] %v1690
                  %v1692 = vld [vmem:[%s1566 + $0x1f0] sm:$0xff]
                  %1693 = vst [vmem:[%s1567 + $0x1f0] sm:$0xff] %v1692
                  %v1694 = vld [vmem:[%s1566 + $0x1f8] sm:$0xff]
                  %1695 = vst [vmem:[%s1567 + $0x1f8] sm:$0xff] %v1694
                  %s1696 = sadd.s32 1, %s1565
                  %p1697 = scmp.ge.s32.totalorder %s1696, %s1556
                  %s1698 = scalar_select %p1697, 0, %s1696
                  %s1699 = smul.u32 %s1698, 512
                  %s1700 = smul.u32 %s1698, 512
                  %s1701 = scalar_lea.vmem %s1333, %s1699 [#allocation3]
                  %s1702 = scalar_lea.vmem %s1343, %s1700
                $region90: #{decoder_forward.1} parent=84 // loop_footer
                  %s1562 = sadd.s32 %s1560, 1
                $region91: #{decoder_forward.1} parent=84 // loop_footer_branch
                  %1559 = sbr.rel target = $region87
                $region92: #{decoder_forward.1} parent=84 // loop_exit
                  _
                %s1703 = sshrl.u32 %s1555, 6
                %s1704 = sand.u32 %s1555, 63
                %s1705 = smul.u32 %s1703, 64
                %s1706 = smul.u32 128, %s1705
                %s1707 = sshra.s32 %s1706, 4
                %s1708 = scalar_lea.vmem %s1333, %s1707 [#allocation3]
                %s1709 = smul.u32 128, %s1705
                %s1710 = sshra.s32 %s1709, 4
                %s1711 = scalar_lea.vmem %s1343, %s1710
                // While loop
                $region93: #{decoder_forward.1} parent=84 // loop_pre_header
                  _
                $region94: #{decoder_forward.1} parent=84 // loop_header
                  %s1715 = sphi 0, %s1717
                  %p1716 = scmp.ge.s32.totalorder %s1715, %s1704
                  %s1720 = sphi 0, %s1727
                  %s1721 = sphi %s1708, %s1730
                  %s1722 = sphi %s1711, %s1731
                $region95: #{decoder_forward.1} parent=84 // loop_header_branch
                  %1719 = sbr.rel (%p1716) target = $region99
                $region96: #{decoder_forward.1} parent=84 // loop_body
                  %v1723 = vld [vmem:[%s1721] sm:$0xff]
                  %1724 = vst [vmem:[%s1722] sm:$0xff] %v1723
                  %s1725 = sadd.s32 1, %s1720
                  %p1726 = scmp.ge.s32.totalorder %s1725, %s1704
                  %s1727 = scalar_select %p1726, 0, %s1725
                  %s1728 = smul.u32 %s1727, 8
                  %s1729 = smul.u32 %s1727, 8
                  %s1730 = scalar_lea.vmem %s1708, %s1728 [#allocation3]
                  %s1731 = scalar_lea.vmem %s1711, %s1729
                $region97: #{decoder_forward.1} parent=84 // loop_footer
                  %s1717 = sadd.s32 %s1715, 1
                $region98: #{decoder_forward.1} parent=84 // loop_footer_branch
                  %1714 = sbr.rel target = $region94
                $region99: #{decoder_forward.1} parent=84 // loop_exit
                  _
                %s1732 = sshllo.u32 0, %s1550
                loop: start=0, step=1, limit=1
                $region100: #{decoder_forward.1} parent=84 // loop_pre_header
                  _
                $region101: #{decoder_forward.1} parent=84 // loop_header
                  %s1734 = sphi 0, %s1738
                  %p1735 = scmp.ge.s32.totalorder %s1734, 1
                  %s1739 = sphi %s1552, %s1552
                  %s1740 = sphi %s1554, %s1554
                $region102: #{decoder_forward.1} parent=84 // loop_header_branch
                  %1737 = sbr.rel (%p1735) target = $region106
                $region103: #{decoder_forward.1} parent=84 // loop_body
                  %v1741 = vld [vmem:[%s1739] sm:%s1732]
                  %1742 = vst [vmem:[%s1740] sm:%s1732] %v1741
                $region104: #{decoder_forward.1} parent=84 // loop_footer
                  %s1738 = sadd.s32 1, %s1734
                $region105: #{decoder_forward.1} parent=84 // loop_footer_branch
                  %1733 = sbr.rel target = $region101
                $region106: #{decoder_forward.1} parent=84 // loop_exit
                  _
              $region85: #{decoder_forward.1} parent=51 // pred_fallthru
                _
            $region52: #{decoder_forward.1} parent=47 // pred_fallthru
              _
            // Predicated region
            $region53: #{decoder_forward.1} parent=47 // pred_check
              %p1351 = pneg %p1347
            $region54: #{decoder_forward.1} parent=47 // pred_check_branch
              %1353 = sbr.rel (%p1351) target = $region56
            $region55: #{decoder_forward.1} parent=47 // pred_region
              %s1354 = sshllo.u32 0, %s1340
              loop: start=0, step=1, limit=1
              $region57: #{decoder_forward.1} parent=55 // loop_pre_header
                _
              $region58: #{decoder_forward.1} parent=55 // loop_header
                %s1356 = sphi 0, %s1360
                %p1357 = scmp.ge.s32.totalorder %s1356, 1
                %s1361 = sphi %s1333, %s1333
                %s1362 = sphi %s1343, %s1343
              $region59: #{decoder_forward.1} parent=55 // loop_header_branch
                %1359 = sbr.rel (%p1357) target = $region63
              $region60: #{decoder_forward.1} parent=55 // loop_body
                %v1363 = vld [vmem:[%s1361] sm:%s1354]
                %1364 = vst [vmem:[%s1362] sm:%s1354] %v1363
              $region61: #{decoder_forward.1} parent=55 // loop_footer
                %s1360 = sadd.s32 1, %s1356
              $region62: #{decoder_forward.1} parent=55 // loop_footer_branch
                %1355 = sbr.rel target = $region58
              $region63: #{decoder_forward.1} parent=55 // loop_exit
                _
            $region56: #{decoder_forward.1} parent=47 // pred_fallthru
              _
          $region48: #{decoder_forward.1} parent=43 // pred_fallthru
            _
          %1743 = vnop
        $region44: #{decoder_forward.1} parent=39 // pred_fallthru
          _
      $region40: #{decoder_forward.1} parent=5 // pred_fallthru
        _
      %p1744 = scmp.le.s32.totalorder 2, %s13
      // Predicated region
      $region107: #{decoder_forward.1} parent=5 // pred_check
        %p1745 = pneg %p1744
      $region108: #{decoder_forward.1} parent=5 // pred_check_branch
        %1747 = sbr.rel (%p1745) target = $region110
      $region109: #{decoder_forward.1} parent=5 // pred_region
        %s1748 = ssub.s32 %s13, 2
        // Predicated region
        $region111: #{decoder_forward.1} parent=109 // pred_check
          %p1749 = pneg %p152
        $region112: #{decoder_forward.1} parent=109 // pred_check_branch
          %1751 = sbr.rel (%p1749) target = $region114
        $region113: #{decoder_forward.1} parent=109 // pred_region
          %s1752 = sand.u32 %s137, 1
          %s1753 = sand.u32 %s137, 1
          %s1754 = smul.addr %s1753, 8
          %s1755 = scalar_lea.vmem [#allocation3], %s1754
        $region114: #{decoder_forward.1} parent=109 // pred_fallthru
          _
      $region110: #{decoder_forward.1} parent=5 // pred_fallthru
        _
    $region6: #{decoder_forward.1} parent=1 // loop_footer
      %s17 = sadd.s32 1, %s13
    $region7: #{decoder_forward.1} parent=1 // loop_footer_branch
      %12 = sbr.rel target = $region3
    $region8: #{decoder_forward.1} parent=1 // loop_exit
      _

</llo_original>
